<compile_context>
chip_gen: v6e
topology: v6e:2x2x1
jax: 0.10.0
libtpu: 0.0.40
codegen_flags: <defaults>
</compile_context>

<pallas_src>
import functools

import jax
import jax.numpy as jnp
from jax.experimental import pallas as pl
from jax.experimental.pallas import tpu as pltpu


def _ffn_kernel(x_ref, g_ref, beta_ref, w1_ref, b1_ref, w2_ref, b2_ref,
                o_ref, xn_ref, *acc_scratch, eps, matmul_dtype, acc_in_out):
    """Grid = (row tiles [parallel], hidden chunks [arbitrary, innermost])."""
    acc_ref = o_ref if acc_in_out else acc_scratch[0]
    k = pl.program_id(1)

    # --- first hidden chunk for this row tile: LayerNorm + accumulator seed ---
    @pl.when(k == 0)
    def _():
        x = x_ref[...].astype(jnp.float32)                        # (tm, size)
        n = x.shape[-1]
        mean = jnp.mean(x, axis=-1, keepdims=True)
        diff = x - mean
        var_unbiased = jnp.sum(diff * diff, axis=-1, keepdims=True) * (
            1.0 / (n - 1))
        inv = 1.0 / (jnp.sqrt(var_unbiased) + eps)                # one divide/row
        xn = g_ref[...] * (diff * inv) + beta_ref[...]
        xn_ref[...] = xn.astype(xn_ref.dtype)          # stored in matmul dtype
        # Seed the accumulator with residual + output bias -> no finalize add.
        acc_ref[...] = (x + b2_ref[...]).astype(acc_ref.dtype)

    # --- FFN over one hidden chunk: Linear -> ReLU -> Linear (accumulate) ---
    h = jnp.dot(xn_ref[...], w1_ref[...], preferred_element_type=jnp.float32)
    h = jnp.maximum(h + b1_ref[...], 0.0)                         # (tm, th)
    # TODO(synk): dropout_1 / dropout_2 are identity (inference mode); training
    # dropout would use pltpu.prng_seed + pltpu.stateful_bernoulli here.
    acc_ref[...] += jnp.dot(h.astype(matmul_dtype), w2_ref[...],
                            preferred_element_type=jnp.float32)

    # --- last hidden chunk: cast/writeback (only when acc is a scratch) ---
    if not acc_in_out:
        @pl.when(k == pl.num_programs(1) - 1)
        def _():
            o_ref[...] = acc_ref[...].astype(o_ref.dtype)


def _pick_hidden_chunk(hidden, th):
    """Return (chunk_width, padded_hidden). Never keeps a large hidden dim
    resident; zero-pads hidden when no MXU-friendly divisor exists."""
    if hidden <= max(th, 256):
        return hidden, hidden                     # small: single full chunk
    th = max(256, min(th, hidden))
    for m in (256, 128):                          # MXU-friendly chunk widths
        c = (th // m) * m
        while c >= m:
            if hidden % c == 0:
                return c, hidden                  # exact divisor, no padding
            c -= m
    th_eff = max(256, (th // 256) * 256)          # pad hidden to a multiple
    return th_eff, pl.cdiv(hidden, th_eff) * th_eff


def positionwise_feed_forward(x, gamma, beta, w1, b1, w2, b2, *,
                              eps=1e-6, tm=None, th=512, matmul_dtype=None):
    """x: (batch, seq, size); w1: (size, hidden); w2: (hidden, size).

    matmul_dtype=None keeps matmuls in f32 (exact); pass jnp.bfloat16 for the
    fast MXU path (weights/LN-cache in bf16, f32 accumulation + residual).
    """
    batch, seq, size = x.shape
    hidden = w1.shape[1]
    mdt = jnp.dtype(jnp.float32 if matmul_dtype is None else matmul_dtype)
    x_dt = jnp.dtype(x.dtype)
    x_it = x_dt.itemsize
    w_it = mdt.itemsize
    acc_in_out = (x_dt == jnp.dtype(jnp.float32))    # accumulate into o_ref

    # Row alignment: (8,128) tiling minimum for f32, (16,128) for bf16.
    _align = {4: 8, 2: 16, 1: 32}
    row_align = max(_align.get(x_it, 8), _align.get(w_it, 8))

    # Per-generation VMEM budget (v5e/v6e ~128 MiB, v7x ~64 MiB per TC).
    try:
        vmem_cap = int(getattr(pltpu.get_tpu_info(), "vmem_capacity_bytes",
                               64 << 20))
    except Exception:
        vmem_cap = 64 << 20                          # conservative fallback
    budget = int(vmem_cap * 0.82)                    # headroom for Mosaic scratch
    small_vmem = vmem_cap <= (72 << 20)              # v7x-like: 64 MiB, 2 TCs

    # Hidden-dim chunking (+ zero-padding of W1/b1/W2 when needed).
    th_eff, Hp = _pick_hidden_chunk(hidden, th)
    n_chunks = Hp // th_eff

    # Row tile: weights are re-streamed once per row tile, so arithmetic
    # intensity ~ 2*tm/w_itemsize flops/byte -> push tm as high as VMEM allows.
    M = batch * seq
    M_rows = pl.cdiv(M, row_align) * row_align
    if tm is None:
        tm = 512 if small_vmem else 1024
    tm_eff = max(row_align, (min(tm, M_rows) // row_align) * row_align)

    def _vmem_bytes(tm_c):
        b = 2 * tm_c * size * x_it                   # x tile, double-buffered
        b += 2 * tm_c * size * x_it                  # out tile, double-buffered
        b += tm_c * size * w_it                      # LayerNorm(x) cache
        if not acc_in_out:
            b += tm_c * size * 4                     # f32 accumulator scratch
        b += 2 * 2 * size * th_eff * w_it            # W1 + W2 chunks (x2 bufs)
        b += 2 * 4 * (3 * size + th_eff)             # gamma/beta/b1/b2 (f32)
        return b

    slack = 8 << 20                                  # Mosaic-internal scratch
    while tm_eff > row_align and _vmem_bytes(tm_eff) + slack > budget:
        tm_eff = max(row_align, ((tm_eff // 2) // row_align) * row_align)

    # On 2-TC / 64-MiB chips make sure both TensorCores get a row tile.
    if small_vmem and M_rows >= 2 * row_align:
        tm_half = pl.cdiv(pl.cdiv(M_rows, 2), row_align) * row_align
        tm_eff = min(tm_eff, tm_half)

    Mp = pl.cdiv(M, tm_eff) * tm_eff
    n_row_tiles = Mp // tm_eff

    # --- operand prep (weights only cast when dtype differs: keep them in
    # bf16 in HBM to avoid a full f32 weight round-trip per call) ---
    x2d = x.reshape(M, size)
    if Mp != M:
        # Zero rows are LayerNorm-safe (std=0 -> /eps, finite) and sliced off.
        x2d = jnp.pad(x2d, ((0, Mp - M), (0, 0)))

    gamma2d = gamma.reshape(1, size).astype(jnp.float32)
    beta2d = beta.reshape(1, size).astype(jnp.float32)
    b1_2d = b1.reshape(1, hidden).astype(jnp.float32)
    b2_2d = b2.reshape(1, size).astype(jnp.float32)
    w1_m = w1 if w1.dtype == mdt else w1.astype(mdt)
    w2_m = w2 if w2.dtype == mdt else w2.astype(mdt)
    # TODO(synk): v7x fp8 weight path (per-chunk scales) would halve weight DMA
    # again; plumb through matmul_dtype once fp8 weights are supplied.
    if Hp != hidden:
        w1_m = jnp.pad(w1_m, ((0, 0), (0, Hp - hidden)))
        w2_m = jnp.pad(w2_m, ((0, Hp - hidden), (0, 0)))
        b1_2d = jnp.pad(b1_2d, ((0, 0), (0, Hp - hidden)))

    kernel = functools.partial(_ffn_kernel, eps=eps, matmul_dtype=mdt,
                               acc_in_out=acc_in_out)

    scratch_shapes = [pltpu.VMEM((tm_eff, size), mdt)]       # LayerNorm cache
    if not acc_in_out:
        scratch_shapes.append(pltpu.VMEM((tm_eff, size), jnp.float32))

    vmem_limit = int(min(budget, max(32 << 20, _vmem_bytes(tm_eff) + slack)))

    cost = pl.CostEstimate(
        flops=4 * Mp * size * Hp + 10 * Mp * size,
        transcendentals=0,
        bytes_accessed=int(2 * Mp * size * x_it
                           + n_row_tiles * 2 * size * Hp * w_it),
    )

    # TODO(synk): if profiling shows exposed weight DMA at small M (decode),
    # sweep pipeline_mode=pl.Buffered(3) on the W1/W2 BlockSpecs.
    out2d = pl.pallas_call(
        kernel,
        out_shape=jax.ShapeDtypeStruct((Mp, size), x.dtype),
        grid_spec=pltpu.PrefetchScalarGridSpec(
            num_scalar_prefetch=0,
            grid=(n_row_tiles, n_chunks),
            in_specs=[
                pl.BlockSpec((tm_eff, size), lambda i, k: (i, 0)),   # x rows
                pl.BlockSpec((1, size), lambda i, k: (0, 0)),        # LN gamma
                pl.BlockSpec((1, size), lambda i, k: (0, 0)),        # LN beta
                pl.BlockSpec((size, th_eff), lambda i, k: (0, k)),   # W1 chunk
                pl.BlockSpec((1, th_eff), lambda i, k: (0, k)),      # b1 chunk
                pl.BlockSpec((th_eff, size), lambda i, k: (k, 0)),   # W2 chunk
                pl.BlockSpec((1, size), lambda i, k: (0, 0)),        # b2
            ],
            out_specs=pl.BlockSpec((tm_eff, size), lambda i, k: (i, 0)),
            scratch_shapes=scratch_shapes,
        ),
        compiler_params=pltpu.CompilerParams(
            dimension_semantics=("parallel", "arbitrary"),
            vmem_limit_bytes=vmem_limit,
        ),
        cost_estimate=cost,
    )(x2d, gamma2d, beta2d, w1_m, b1_2d, w2_m, b2_2d)

    return out2d[:M].reshape(batch, seq, size)


def _reference(x, gamma, beta, w1, b1, w2, b2, eps=1e-6):
    xf = x.astype(jnp.float32)
    n = xf.shape[-1]
    mean = jnp.mean(xf, axis=-1, keepdims=True)
    var = jnp.sum((xf - mean) ** 2, axis=-1, keepdims=True) / (n - 1)
    xn = gamma * (xf - mean) / (jnp.sqrt(var) + eps) + beta
    h = jnp.maximum(xn @ w1.astype(jnp.float32) + b1, 0.0)
    y = h @ w2.astype(jnp.float32) + b2
    return (y + xf).astype(x.dtype)


if __name__ == "__main__":
    # Small-but-lane-dense shapes: d_model=128 (full 128-lane vregs), d_ff=512.
    batch, seq, size, hidden = 4, 96, 128, 512

    key = jax.random.PRNGKey(0)
    kx, kw1, kb1, kw2, kb2 = jax.random.split(key, 5)

    x = jax.random.normal(kx, (batch, seq, size), dtype=jnp.float32)

    # Deterministic parameter init (PyTorch-Linear-like uniform bounds).
    bound1 = 1.0 / (size ** 0.5)
    bound2 = 1.0 / (hidden ** 0.5)
    w1 = jax.random.uniform(kw1, (size, hidden), jnp.float32, -bound1, bound1)
    b1 = jax.random.uniform(kb1, (hidden,), jnp.float32, -bound1, bound1)
    w2 = jax.random.uniform(kw2, (hidden, size), jnp.float32, -bound2, bound2)
    b2 = jax.random.uniform(kb2, (size,), jnp.float32, -bound2, bound2)
    gamma = jnp.ones((size,), jnp.float32)   # LayerNorm a_2
    beta = jnp.zeros((size,), jnp.float32)   # LayerNorm b_2

    ref = _reference(x, gamma, beta, w1, b1, w2, b2)

    # 1) f32 path, th=256 -> 2 hidden chunks; accumulator IS the f32 output.
    out = positionwise_feed_forward(x, gamma, beta, w1, b1, w2, b2, th=256)
    out = jax.block_until_ready(out)
    assert out.shape == x.shape and out.dtype == x.dtype
    assert jnp.allclose(out, ref, atol=1e-4, rtol=1e-4), "f32 mismatch vs ref"

    # 2) bf16 MXU path with weights stored in bf16 (no per-call wrapper cast).
    w1_bf, w2_bf = w1.astype(jnp.bfloat16), w2.astype(jnp.bfloat16)
    out_bf = positionwise_feed_forward(x, gamma, beta, w1_bf, b1, w2_bf, b2,
                                       th=256, matmul_dtype=jnp.bfloat16)
    out_bf = jax.block_until_ready(out_bf)
    assert out_bf.shape == x.shape and out_bf.dtype == x.dtype
    assert jnp.allclose(out_bf, ref, atol=1e-1, rtol=1e-1), "bf16 mismatch"

    # 3) bf16 activations (bf16 output -> f32 scratch accumulator path).
    x_bf = x.astype(jnp.bfloat16)
    ref_bf = _reference(x_bf, gamma, beta, w1_bf, b1, w2_bf,
                        b2).astype(jnp.float32)
    out_xbf = positionwise_feed_forward(x_bf, gamma, beta, w1_bf, b1, w2_bf,
                                        b2, th=256,
                                        matmul_dtype=jnp.bfloat16)
    out_xbf = jax.block_until_ready(out_xbf)
    assert out_xbf.shape == x_bf.shape and out_xbf.dtype == x_bf.dtype
    assert jnp.allclose(out_xbf.astype(jnp.float32), ref_bf,
                        atol=1.5e-1, rtol=1.5e-1), "bf16-activation mismatch"

    print("KERNEL_OK")
</pallas_src>

<mosaic_0001>
module attributes {stable_mosaic.version = 11 : i64} {
  func.func @_ffn_kernel(%arg0: i32, %arg1: i32, %arg2: memref<192x128xf32, #tpu.memory_space<vmem>>, %arg3: memref<1x128xf32, #tpu.memory_space<vmem>>, %arg4: memref<1x128xf32, #tpu.memory_space<vmem>>, %arg5: memref<128x256xf32, #tpu.memory_space<vmem>>, %arg6: memref<1x256xf32, #tpu.memory_space<vmem>>, %arg7: memref<256x128xf32, #tpu.memory_space<vmem>>, %arg8: memref<1x128xf32, #tpu.memory_space<vmem>>, %arg9: memref<192x128xf32, #tpu.memory_space<vmem>>, %arg10: memref<192x128xf32, #tpu.memory_space<vmem>>) attributes {dimension_semantics = [#tpu.dimension_semantics<parallel>, #tpu.dimension_semantics<arbitrary>], iteration_bounds = array<i64: 2, 2>, scalar_prefetch = 0 : i64, scratch_operands = 1 : i64, tpu.core_type = #tpu.core_type<tc>, window_params = [{transform_indices = @transform_0, window_bounds = array<i64: 192, 128>}, {pipeline_mode = #tpu.pipeline_mode<synchronous>, transform_indices = @transform_1, window_bounds = array<i64: 1, 128>}, {pipeline_mode = #tpu.pipeline_mode<synchronous>, transform_indices = @transform_2, window_bounds = array<i64: 1, 128>}, {transform_indices = @transform_3, window_bounds = array<i64: 128, 256>}, {transform_indices = @transform_4, window_bounds = array<i64: 1, 256>}, {transform_indices = @transform_5, window_bounds = array<i64: 256, 128>}, {pipeline_mode = #tpu.pipeline_mode<synchronous>, transform_indices = @transform_6, window_bounds = array<i64: 1, 128>}, {transform_indices = @transform_7, window_bounds = array<i64: 192, 128>}]} {
    %c0_i32 = arith.constant 0 : i32
    %0 = arith.cmpi eq, %arg1, %c0_i32 : i32
    %1 = arith.extui %0 : i1 to i32
    %c0_i32_0 = arith.constant 0 : i32
    %2 = arith.cmpi ne, %1, %c0_i32_0 : i32
    scf.if %2 {
      %c0_14 = arith.constant 0 : index
      %c0_15 = arith.constant 0 : index
      %16 = vector.load %arg2[%c0_14, %c0_15] : memref<192x128xf32, #tpu.memory_space<vmem>>, vector<192x128xf32>
      %cst_16 = arith.constant dense<0.000000e+00> : vector<192xf32>
      %17 = vector.multi_reduction <add>, %16, %cst_16 [1] : vector<192x128xf32> to vector<192xf32>
      %18 = vector.shape_cast %17 : vector<192xf32> to vector<192x1xf32>
      %cst_17 = arith.constant 1.280000e+02 : f32
      %19 = vector.broadcast %cst_17 : f32 to vector<192x1xf32>
      %20 = arith.divf %18, %19 : vector<192x1xf32>
      %21 = vector.broadcast %20 : vector<192x1xf32> to vector<192x128xf32>
      %22 = arith.subf %16, %21 : vector<192x128xf32>
      %23 = arith.mulf %22, %22 : vector<192x128xf32>
      %cst_18 = arith.constant dense<0.000000e+00> : vector<192xf32>
      %24 = vector.multi_reduction <add>, %23, %cst_18 [1] : vector<192x128xf32> to vector<192xf32>
      %25 = vector.shape_cast %24 : vector<192xf32> to vector<192x1xf32>
      %cst_19 = arith.constant 0.00787401571 : f32
      %26 = vector.broadcast %cst_19 : f32 to vector<192x1xf32>
      %27 = arith.mulf %25, %26 : vector<192x1xf32>
      %28 = math.sqrt %27 : vector<192x1xf32>
      %cst_20 = arith.constant 9.99999997E-7 : f32
      %29 = vector.broadcast %cst_20 : f32 to vector<192x1xf32>
      %30 = arith.addf %28, %29 : vector<192x1xf32>
      %cst_21 = arith.constant 1.000000e+00 : f32
      %31 = vector.broadcast %cst_21 : f32 to vector<192x1xf32>
      %32 = arith.divf %31, %30 : vector<192x1xf32>
      %c0_22 = arith.constant 0 : index
      %c0_23 = arith.constant 0 : index
      %33 = vector.load %arg3[%c0_22, %c0_23] : memref<1x128xf32, #tpu.memory_space<vmem>>, vector<1x128xf32>
      %34 = vector.broadcast %32 : vector<192x1xf32> to vector<192x128xf32>
      %35 = arith.mulf %22, %34 : vector<192x128xf32>
      %36 = vector.broadcast %33 : vector<1x128xf32> to vector<192x128xf32>
      %37 = arith.mulf %36, %35 : vector<192x128xf32>
      %c0_24 = arith.constant 0 : index
      %c0_25 = arith.constant 0 : index
      %38 = vector.load %arg4[%c0_24, %c0_25] : memref<1x128xf32, #tpu.memory_space<vmem>>, vector<1x128xf32>
      %39 = vector.broadcast %38 : vector<1x128xf32> to vector<192x128xf32>
      %40 = arith.addf %37, %39 : vector<192x128xf32>
      %c0_26 = arith.constant 0 : index
      %c0_27 = arith.constant 0 : index
      %41 = vector.load %arg10[%c0_26, %c0_27] : memref<192x128xf32, #tpu.memory_space<vmem>>, vector<192x128xf32>
      tpu.vector_store %arg10[%c0_26, %c0_27], %40 {strides = array<i32>} : memref<192x128xf32, #tpu.memory_space<vmem>>, vector<192x128xf32>,
      %c0_28 = arith.constant 0 : index
      %c0_29 = arith.constant 0 : index
      %42 = vector.load %arg8[%c0_28, %c0_29] : memref<1x128xf32, #tpu.memory_space<vmem>>, vector<1x128xf32>
      %43 = vector.broadcast %42 : vector<1x128xf32> to vector<192x128xf32>
      %44 = arith.addf %16, %43 : vector<192x128xf32>
      %c0_30 = arith.constant 0 : index
      %c0_31 = arith.constant 0 : index
      %45 = vector.load %arg9[%c0_30, %c0_31] : memref<192x128xf32, #tpu.memory_space<vmem>>, vector<192x128xf32>
      tpu.vector_store %arg9[%c0_30, %c0_31], %44 {strides = array<i32>} : memref<192x128xf32, #tpu.memory_space<vmem>>, vector<192x128xf32>,
    } else {
    }
    %c0 = arith.constant 0 : index
    %c0_1 = arith.constant 0 : index
    %3 = vector.load %arg10[%c0, %c0_1] : memref<192x128xf32, #tpu.memory_space<vmem>>, vector<192x128xf32>
    %c0_2 = arith.constant 0 : index
    %c0_3 = arith.constant 0 : index
    %4 = vector.load %arg5[%c0_2, %c0_3] : memref<128x256xf32, #tpu.memory_space<vmem>>, vector<128x256xf32>
    %cst = arith.constant dense<0.000000e+00> : vector<192x256xf32>
    %5 = tpu.matmul %3, %4, %cst {dimension_numbers = #tpu.dot_dimension_numbers<[1], [0], [0], [1], [0, 0, 1, 1], [], []>} : vector<192x128xf32>, vector<128x256xf32>, vector<192x256xf32> -> vector<192x256xf32>
    %c0_4 = arith.constant 0 : index
    %c0_5 = arith.constant 0 : index
    %6 = vector.load %arg6[%c0_4, %c0_5] : memref<1x256xf32, #tpu.memory_space<vmem>>, vector<1x256xf32>
    %7 = vector.broadcast %6 : vector<1x256xf32> to vector<192x256xf32>
    %8 = arith.addf %5, %7 : vector<192x256xf32>
    %cst_6 = arith.constant 0.000000e+00 : f32
    %9 = vector.broadcast %cst_6 : f32 to vector<192x256xf32>
    %10 = arith.maximumf %8, %9 : vector<192x256xf32>
    %c0_7 = arith.constant 0 : index
    %c0_8 = arith.constant 0 : index
    %11 = vector.load %arg9[%c0_7, %c0_8] : memref<192x128xf32, #tpu.memory_space<vmem>>, vector<192x128xf32>
    %c0_9 = arith.constant 0 : index
    %c0_10 = arith.constant 0 : index
    %12 = vector.load %arg7[%c0_9, %c0_10] : memref<256x128xf32, #tpu.memory_space<vmem>>, vector<256x128xf32>
    %cst_11 = arith.constant dense<0.000000e+00> : vector<192x128xf32>
    %13 = tpu.matmul %10, %12, %cst_11 {dimension_numbers = #tpu.dot_dimension_numbers<[1], [0], [0], [1], [0, 0, 1, 1], [], []>} : vector<192x256xf32>, vector<256x128xf32>, vector<192x128xf32> -> vector<192x128xf32>
    %14 = arith.addf %11, %13 : vector<192x128xf32>
    %c0_12 = arith.constant 0 : index
    %c0_13 = arith.constant 0 : index
    %15 = vector.load %arg9[%c0_12, %c0_13] : memref<192x128xf32, #tpu.memory_space<vmem>>, vector<192x128xf32>
    tpu.vector_store %arg9[%c0_12, %c0_13], %14 {strides = array<i32>} : memref<192x128xf32, #tpu.memory_space<vmem>>, vector<192x128xf32>,
    return
  }
  func.func @transform_0(%arg0: i32, %arg1: i32) -> (i32, i32) {
    %c0_i32 = arith.constant 0 : i32
    %c0_i32_0 = arith.constant 0 : i32
    return %arg0, %c0_i32 : i32, i32
  }
  func.func @transform_1(%arg0: i32, %arg1: i32) -> (i32, i32) {
    %c0_i32 = arith.constant 0 : i32
    %c0_i32_0 = arith.constant 0 : i32
    %c0_i32_1 = arith.constant 0 : i32
    return %c0_i32, %c0_i32_0 : i32, i32
  }
  func.func @transform_2(%arg0: i32, %arg1: i32) -> (i32, i32) {
    %c0_i32 = arith.constant 0 : i32
    %c0_i32_0 = arith.constant 0 : i32
    %c0_i32_1 = arith.constant 0 : i32
    return %c0_i32, %c0_i32_0 : i32, i32
  }
  func.func @transform_3(%arg0: i32, %arg1: i32) -> (i32, i32) {
    %c0_i32 = arith.constant 0 : i32
    %c0_i32_0 = arith.constant 0 : i32
    return %c0_i32, %arg1 : i32, i32
  }
  func.func @transform_4(%arg0: i32, %arg1: i32) -> (i32, i32) {
    %c0_i32 = arith.constant 0 : i32
    %c0_i32_0 = arith.constant 0 : i32
    return %c0_i32, %arg1 : i32, i32
  }
  func.func @transform_5(%arg0: i32, %arg1: i32) -> (i32, i32) {
    %c0_i32 = arith.constant 0 : i32
    %c0_i32_0 = arith.constant 0 : i32
    return %arg1, %c0_i32 : i32, i32
  }
  func.func @transform_6(%arg0: i32, %arg1: i32) -> (i32, i32) {
    %c0_i32 = arith.constant 0 : i32
    %c0_i32_0 = arith.constant 0 : i32
    %c0_i32_1 = arith.constant 0 : i32
    return %c0_i32, %c0_i32_0 : i32, i32
  }
  func.func @transform_7(%arg0: i32, %arg1: i32) -> (i32, i32) {
    %c0_i32 = arith.constant 0 : i32
    %c0_i32_0 = arith.constant 0 : i32
    return %arg0, %c0_i32 : i32, i32
  }
}

</mosaic_0001>

<llo_original>
// kernel: tpu_custom_call.1
$region0: #{tpu_custom_call.1}
  #allocation0 [shape = 'u32[]', space=smem, size = 0x4, offset = 0x4, fixed_abs, tag = 'smem constant byte address 0x4 - core index']
  #allocation1 [shape = 'u32[144,128]{1,0:T(1,128)}', space=vmem, size = 0x12000, scoped, tag = 'internal scratch']
  #allocation2 [shape = 'f32[192,128]{1,0:T(8,128)}', space=vmem, size = 0x18000, scoped, tag = 'scratch operand']
  %s0 = inlined_call_operand.hbm [shape: f32[384,128], index: 0, kind: input, shape index: {}]
  %s1 = inlined_call_operand.vmem [shape: f32[1,128], index: 1, kind: input, shape index: {}]
  %s2 = inlined_call_operand.vmem [shape: f32[1,128], index: 2, kind: input, shape index: {}]
  %s3 = inlined_call_operand.hbm [shape: f32[128,512], index: 3, kind: input, shape index: {}]
  %s4 = inlined_call_operand.vmem [shape: f32[1,512], index: 4, kind: input, shape index: {}]
  %s5 = inlined_call_operand.hbm [shape: f32[512,128], index: 5, kind: input, shape index: {}]
  %s6 = inlined_call_operand.vmem [shape: f32[1,128], index: 6, kind: input, shape index: {}]
  %s7 = inlined_call_operand.hbm [shape: f32[384,128], index: 7, kind: output, shape index: {}]
  %s8 = sld [smem:[#allocation0]]
  $region77: #{tpu_custom_call.1} parent=0
    _
  %s10 = ssub.s32 1, %s8
  %s11 = scalar_select 0, %s10, %s8
  $region1: #{tpu_custom_call.1} parent=0
    #allocation3 [shape = 'u8[196608]{0}', space=vmem, size = 0x30000, scoped, tag = 'input window, operand 0']
    #allocation4 [shape = 's32[2]{0}', space=sflag, size = 0x8, scoped, tag = 'scoped memory for tpu_custom_call.1']
    #allocation5 [shape = 's32[2]{0}', space=sflag, size = 0x8, scoped, tag = 'scoped memory for tpu_custom_call.1']
    #allocation6 [shape = 'u8[262144]{0}', space=vmem, size = 0x40000, scoped, tag = 'input window, operand 3']
    #allocation7 [shape = 's32[2]{0}', space=sflag, size = 0x8, scoped, tag = 'scoped memory for tpu_custom_call.1']
    #allocation8 [shape = 'u8[262144]{0}', space=vmem, size = 0x40000, scoped, tag = 'input window, operand 5']
    #allocation9 [shape = 'u8[196608]{0}', space=vmem, size = 0x30000, scoped, tag = 'output window, operand 0']
    %12 = vsyncpa [#allocation4], 0
    %s13 = scalar_lea.sflag [#allocation4], 1
    %14 = vsyncpa %s13, 0
    %15 = vsyncpa [#allocation7], 0
    %s16 = scalar_lea.sflag [#allocation7], 1
    %17 = vsyncpa %s16, 0
    %18 = vsyncpa [#allocation5], 0
    %s19 = scalar_lea.sflag [#allocation5], 1
    %20 = vsyncpa %s19, 0
    loop: start=0, step=1, limit=6
    $region2: #{tpu_custom_call.1} parent=1 // loop_pre_header
      _
    $region3: #{tpu_custom_call.1} parent=1 // loop_header
      %s22 = sphi 0, %s26
      %p23 = scmp.ge.s32.totalorder %s22, 6
      %s29 = sphi 0, %s41
      %s30 = sphi 0, %s37
      %s31 = sphi 0, %s29
      %s32 = sphi 0, %s30
      %s33 = sphi 0, %s31
      %s34 = sphi 0, %s32
      %s44 = sphi 0, %s46
      %s47 = sphi 0, %s44
      %s48 = sphi 0, %s47
      %s64 = sphi 0, %s48
      %s68 = sphi 0, %s68
      %s70 = sphi 0, %s68
      %s71 = sphi 0, %s70
      %s85 = sphi 0, %s71
      %s89 = sphi 0, %s89
      %s91 = sphi 0, %s89
      %s92 = sphi 0, %s91
      %s106 = sphi 0, %s92
      %s112 = sphi 0, %s114
      %s115 = sphi 0, %s112
      %s116 = sphi 0, %s115
      %s132 = sphi 0, %s116
      %s138 = sphi 0, %s140
      %s141 = sphi 0, %s138
      %s142 = sphi 0, %s141
      %s158 = sphi 0, %s142
      %s164 = sphi 0, %s166
      %s167 = sphi 0, %s164
      %s168 = sphi 0, %s167
      %s184 = sphi 0, %s168
      %s188 = sphi 0, %s188
      %s190 = sphi 0, %s188
      %s191 = sphi 0, %s190
      %s205 = sphi 0, %s191
      %s211 = sphi 0, %s213
      %s214 = sphi 0, %s211
      %s215 = sphi 0, %s214
      %s231 = sphi 0, %s215
    $region4: #{tpu_custom_call.1} parent=1 // loop_header_branch
      %25 = sbr.rel (%p23) target = $region8
    $region5: #{tpu_custom_call.1} parent=1 // loop_body
      %s27 = ssub.s32 %s22, 1
      %s28 = ssub.s32 %s22, 2
      %s35 = sadd.s32 1, %s30
      %p36 = scmp.ge.s32.totalorder %s35, 2
      %s37 = scalar_select %p36, 0, %s35
      %s38 = sadd.s32 1, %s29
      %s39 = scalar_select %p36, %s38, %s29
      %p40 = scmp.ge.s32.totalorder %s39, 2
      %s41 = scalar_select %p40, 0, %s39
      %s42 = ssub.s32 %s29, %s41
      %p43 = scmp.eq.s32.totalorder %s42, 0
      %s45 = sadd.s32 %s44, 1
      %s46 = scalar_select %p43, %s44, %s45
      %p49 = pneg %p43
      %p50 = scmp.eq.s32.totalorder %s22, 3
      %p51 = por %p49, %p50
      %p52 = scmp.ne.s32.totalorder %s44, %s47
      %p53 = scmp.eq.s32.totalorder %s22, 0
      %p54 = por %p52, %p53
      %p55 = scmp.ne.s32.totalorder %s44, %s47
      %p56 = scmp.eq.s32.totalorder %s27, 3
      %p57 = por %p55, %p56
      %p58 = scmp.ne.s32.totalorder %s47, %s48
      %p59 = scmp.eq.s32.totalorder %s27, 0
      %p60 = por %p58, %p59
      %p61 = scmp.ne.s32.totalorder %s47, %s48
      %p62 = scmp.eq.s32.totalorder %s28, 3
      %p63 = por %p61, %p62
      %p65 = scmp.ne.s32.totalorder %s48, %s64
      %p66 = scmp.eq.s32.totalorder %s28, 0
      %p67 = por %p65, %p66
      %s69 = sadd.s32 %s68, 1
      %p72 = scmp.eq.s32.totalorder %s22, 3
      %p73 = scmp.ne.s32.totalorder %s68, %s70
      %p74 = scmp.eq.s32.totalorder %s22, 0
      %p75 = por %p73, %p74
      %p76 = scmp.ne.s32.totalorder %s68, %s70
      %p77 = scmp.eq.s32.totalorder %s27, 3
      %p78 = por %p76, %p77
      %p79 = scmp.ne.s32.totalorder %s70, %s71
      %p80 = scmp.eq.s32.totalorder %s27, 0
      %p81 = por %p79, %p80
      %p82 = scmp.ne.s32.totalorder %s70, %s71
      %p83 = scmp.eq.s32.totalorder %s28, 3
      %p84 = por %p82, %p83
      %p86 = scmp.ne.s32.totalorder %s71, %s85
      %p87 = scmp.eq.s32.totalorder %s28, 0
      %p88 = por %p86, %p87
      %s90 = sadd.s32 %s89, 1
      %p93 = scmp.eq.s32.totalorder %s22, 3
      %p94 = scmp.ne.s32.totalorder %s89, %s91
      %p95 = scmp.eq.s32.totalorder %s22, 0
      %p96 = por %p94, %p95
      %p97 = scmp.ne.s32.totalorder %s89, %s91
      %p98 = scmp.eq.s32.totalorder %s27, 3
      %p99 = por %p97, %p98
      %p100 = scmp.ne.s32.totalorder %s91, %s92
      %p101 = scmp.eq.s32.totalorder %s27, 0
      %p102 = por %p100, %p101
      %p103 = scmp.ne.s32.totalorder %s91, %s92
      %p104 = scmp.eq.s32.totalorder %s28, 3
      %p105 = por %p103, %p104
      %p107 = scmp.ne.s32.totalorder %s92, %s106
      %p108 = scmp.eq.s32.totalorder %s28, 0
      %p109 = por %p107, %p108
      %s110 = ssub.s32 %s30, %s37
      %p111 = scmp.eq.s32.totalorder %s110, 0
      %s113 = sadd.s32 %s112, 1
      %s114 = scalar_select %p111, %s112, %s113
      %p117 = pneg %p111
      %p118 = scmp.eq.s32.totalorder %s22, 3
      %p119 = por %p117, %p118
      %p120 = scmp.ne.s32.totalorder %s112, %s115
      %p121 = scmp.eq.s32.totalorder %s22, 0
      %p122 = por %p120, %p121
      %p123 = scmp.ne.s32.totalorder %s112, %s115
      %p124 = scmp.eq.s32.totalorder %s27, 3
      %p125 = por %p123, %p124
      %p126 = scmp.ne.s32.totalorder %s115, %s116
      %p127 = scmp.eq.s32.totalorder %s27, 0
      %p128 = por %p126, %p127
      %p129 = scmp.ne.s32.totalorder %s115, %s116
      %p130 = scmp.eq.s32.totalorder %s28, 3
      %p131 = por %p129, %p130
      %p133 = scmp.ne.s32.totalorder %s116, %s132
      %p134 = scmp.eq.s32.totalorder %s28, 0
      %p135 = por %p133, %p134
      %s136 = ssub.s32 %s30, %s37
      %p137 = scmp.eq.s32.totalorder %s136, 0
      %s139 = sadd.s32 %s138, 1
      %s140 = scalar_select %p137, %s138, %s139
      %p143 = pneg %p137
      %p144 = scmp.eq.s32.totalorder %s22, 3
      %p145 = por %p143, %p144
      %p146 = scmp.ne.s32.totalorder %s138, %s141
      %p147 = scmp.eq.s32.totalorder %s22, 0
      %p148 = por %p146, %p147
      %p149 = scmp.ne.s32.totalorder %s138, %s141
      %p150 = scmp.eq.s32.totalorder %s27, 3
      %p151 = por %p149, %p150
      %p152 = scmp.ne.s32.totalorder %s141, %s142
      %p153 = scmp.eq.s32.totalorder %s27, 0
      %p154 = por %p152, %p153
      %p155 = scmp.ne.s32.totalorder %s141, %s142
      %p156 = scmp.eq.s32.totalorder %s28, 3
      %p157 = por %p155, %p156
      %p159 = scmp.ne.s32.totalorder %s142, %s158
      %p160 = scmp.eq.s32.totalorder %s28, 0
      %p161 = por %p159, %p160
      %s162 = ssub.s32 %s30, %s37
      %p163 = scmp.eq.s32.totalorder %s162, 0
      %s165 = sadd.s32 %s164, 1
      %s166 = scalar_select %p163, %s164, %s165
      %p169 = pneg %p163
      %p170 = scmp.eq.s32.totalorder %s22, 3
      %p171 = por %p169, %p170
      %p172 = scmp.ne.s32.totalorder %s164, %s167
      %p173 = scmp.eq.s32.totalorder %s22, 0
      %p174 = por %p172, %p173
      %p175 = scmp.ne.s32.totalorder %s164, %s167
      %p176 = scmp.eq.s32.totalorder %s27, 3
      %p177 = por %p175, %p176
      %p178 = scmp.ne.s32.totalorder %s167, %s168
      %p179 = scmp.eq.s32.totalorder %s27, 0
      %p180 = por %p178, %p179
      %p181 = scmp.ne.s32.totalorder %s167, %s168
      %p182 = scmp.eq.s32.totalorder %s28, 3
      %p183 = por %p181, %p182
      %p185 = scmp.ne.s32.totalorder %s168, %s184
      %p186 = scmp.eq.s32.totalorder %s28, 0
      %p187 = por %p185, %p186
      %s189 = sadd.s32 %s188, 1
      %p192 = scmp.eq.s32.totalorder %s22, 3
      %p193 = scmp.ne.s32.totalorder %s188, %s190
      %p194 = scmp.eq.s32.totalorder %s22, 0
      %p195 = por %p193, %p194
      %p196 = scmp.ne.s32.totalorder %s188, %s190
      %p197 = scmp.eq.s32.totalorder %s27, 3
      %p198 = por %p196, %p197
      %p199 = scmp.ne.s32.totalorder %s190, %s191
      %p200 = scmp.eq.s32.totalorder %s27, 0
      %p201 = por %p199, %p200
      %p202 = scmp.ne.s32.totalorder %s190, %s191
      %p203 = scmp.eq.s32.totalorder %s28, 3
      %p204 = por %p202, %p203
      %p206 = scmp.ne.s32.totalorder %s191, %s205
      %p207 = scmp.eq.s32.totalorder %s28, 0
      %p208 = por %p206, %p207
      %s209 = ssub.s32 %s29, %s41
      %p210 = scmp.eq.s32.totalorder %s209, 0
      %s212 = sadd.s32 %s211, 1
      %s213 = scalar_select %p210, %s211, %s212
      %p216 = pneg %p210
      %p217 = scmp.eq.s32.totalorder %s22, 3
      %p218 = por %p216, %p217
      %p219 = scmp.ne.s32.totalorder %s211, %s214
      %p220 = scmp.eq.s32.totalorder %s22, 0
      %p221 = por %p219, %p220
      %p222 = scmp.ne.s32.totalorder %s211, %s214
      %p223 = scmp.eq.s32.totalorder %s27, 3
      %p224 = por %p222, %p223
      %p225 = scmp.ne.s32.totalorder %s214, %s215
      %p226 = scmp.eq.s32.totalorder %s27, 0
      %p227 = por %p225, %p226
      %p228 = scmp.ne.s32.totalorder %s214, %s215
      %p229 = scmp.eq.s32.totalorder %s28, 3
      %p230 = por %p228, %p229
      %p232 = scmp.ne.s32.totalorder %s215, %s231
      %p233 = scmp.eq.s32.totalorder %s28, 0
      %p234 = por %p232, %p233
      %p235 = scmp.le.s32.totalorder 1, %s22
      %p236 = scmp.lt.s32.totalorder %s22, 5
      %p237 = pnand %p235, %p236
      %p238 = pneg %p237
      // Predicated region
      $region9: #{tpu_custom_call.1} parent=5 // pred_check
        _
      $region10: #{tpu_custom_call.1} parent=5 // pred_check_branch
        %240 = sbr.rel (%p237) target = $region12
      $region11: #{tpu_custom_call.1} parent=5 // pred_region
        %s241 = ssub.s32 %s22, 1
        // Predicated region
        $region13: #{tpu_custom_call.1} parent=11 // pred_check
          %p242 = pneg %p81
        $region14: #{tpu_custom_call.1} parent=11 // pred_check_branch
          %244 = sbr.rel (%p242) target = $region16
        $region15: #{tpu_custom_call.1} parent=11 // pred_region
          _
        $region16: #{tpu_custom_call.1} parent=11 // pred_fallthru
          _
        // Predicated region
        $region17: #{tpu_custom_call.1} parent=11 // pred_check
          %p245 = pneg %p102
        $region18: #{tpu_custom_call.1} parent=11 // pred_check_branch
          %247 = sbr.rel (%p245) target = $region20
        $region19: #{tpu_custom_call.1} parent=11 // pred_region
          _
        $region20: #{tpu_custom_call.1} parent=11 // pred_fallthru
          _
        // Predicated region
        $region21: #{tpu_custom_call.1} parent=11 // pred_check
          %p248 = pneg %p201
        $region22: #{tpu_custom_call.1} parent=11 // pred_check_branch
          %250 = sbr.rel (%p248) target = $region24
        $region23: #{tpu_custom_call.1} parent=11 // pred_region
          _
        $region24: #{tpu_custom_call.1} parent=11 // pred_fallthru
          _
      $region12: #{tpu_custom_call.1} parent=5 // pred_fallthru
        _
      %p251 = scmp.lt.s32.totalorder %s22, 4
      // Predicated region
      $region25: #{tpu_custom_call.1} parent=5 // pred_check
        %p252 = pneg %p251
      $region26: #{tpu_custom_call.1} parent=5 // pred_check_branch
        %254 = sbr.rel (%p252) target = $region28
      $region27: #{tpu_custom_call.1} parent=5 // pred_region
        // Predicated region
        $region29: #{tpu_custom_call.1} parent=27 // pred_check
          %p255 = pneg %p54
        $region30: #{tpu_custom_call.1} parent=27 // pred_check_branch
          %257 = sbr.rel (%p255) target = $region32
        $region31: #{tpu_custom_call.1} parent=27 // pred_region
          %s258 = sand.u32 %s44, 1
          %s259 = scalar_lea.sflag [#allocation4], %s258
          %s260 = sand.u32 %s44, 1
          %s261 = smul.addr %s260, 192
          %s262 = scalar_lea.vmem [#allocation3], %s261
          %s263 = smul.u32 24, %s29
          %s265 = ssub.s32 3072, 3072
          %266 = vsyncadd %s259, %s265
          %s267 = smul.addr %s263, 128
          %s268 = scalar_lea.hbm %s0, %s267
          %s269 = sshll.u32 %s262, 4
          %s270 = int_to_ptr.vmem [resolvable:$true] %s269
          %275 = dma.hbm_to_vmem [thread:$0]  %s268, 3072, %s270, %s259, 128, 128, 8
        $region32: #{tpu_custom_call.1} parent=27 // pred_fallthru
          _
        // Predicated region
        $region33: #{tpu_custom_call.1} parent=27 // pred_check
          %p276 = pneg %p122
        $region34: #{tpu_custom_call.1} parent=27 // pred_check_branch
          %278 = sbr.rel (%p276) target = $region36
        $region35: #{tpu_custom_call.1} parent=27 // pred_region
          %s279 = sand.u32 %s22, 1
          %s280 = scalar_lea.sflag [#allocation7], %s279
          %s281 = sand.u32 %s112, 1
          %s282 = smul.addr %s281, 256
          %s283 = scalar_lea.vmem [#allocation6], %s282
          %s284 = smul.u32 2, %s30
          %s286 = ssub.s32 4096, 4096
          %287 = vsyncadd %s280, %s286
          %s288 = smul.addr %s284, 128
          %s289 = scalar_lea.hbm %s3, %s288
          %s290 = sshll.u32 %s283, 4
          %s291 = int_to_ptr.vmem [resolvable:$true] %s290
          %296 = dma.hbm_to_vmem [thread:$0]  %s289, 4096, %s291, %s280, 512, 256, 16
        $region36: #{tpu_custom_call.1} parent=27 // pred_fallthru
          _
        // Predicated region
        $region37: #{tpu_custom_call.1} parent=27 // pred_check
          %p297 = pneg %p148
        $region38: #{tpu_custom_call.1} parent=27 // pred_check_branch
          %299 = sbr.rel (%p297) target = $region40
        $region39: #{tpu_custom_call.1} parent=27 // pred_region
          %s300 = smul.u32 2, %s30
          %p301 = scmp.lt.s32.totalorder %s300, 3
          %s302 = scalar_select %p301, %s300, 3
          %s303 = scalar_lea.vmem %s4, %s302
          %s304 = smul.u32 2, %s30
        $region40: #{tpu_custom_call.1} parent=27 // pred_fallthru
          _
        // Predicated region
        $region41: #{tpu_custom_call.1} parent=27 // pred_check
          %p305 = pneg %p174
        $region42: #{tpu_custom_call.1} parent=27 // pred_check_branch
          %307 = sbr.rel (%p305) target = $region44
        $region43: #{tpu_custom_call.1} parent=27 // pred_region
          %s308 = sand.u32 %s22, 1
          %s309 = scalar_lea.sflag [#allocation7], %s308
          %s310 = sand.u32 %s164, 1
          %s311 = smul.addr %s310, 256
          %s312 = scalar_lea.vmem [#allocation8], %s311
          %s313 = smul.u32 32, %s30
          %s315 = ssub.s32 4096, 4096
          %316 = vsyncadd %s309, %s315
          %s317 = smul.addr %s313, 128
          %s318 = scalar_lea.hbm %s5, %s317
          %s319 = sshll.u32 %s312, 4
          %s320 = int_to_ptr.vmem [resolvable:$true] %s319
          %325 = dma.hbm_to_vmem [thread:$0]  %s318, 4096, %s320, %s309, 128, 128, 8
        $region44: #{tpu_custom_call.1} parent=27 // pred_fallthru
          _
      $region28: #{tpu_custom_call.1} parent=5 // pred_fallthru
        _
      %p326 = scmp.le.s32.totalorder 1, %s22
      %p327 = scmp.lt.s32.totalorder %s22, 5
      %p328 = pnand %p326, %p327
      %p329 = pneg %p328
      // Predicated region
      $region45: #{tpu_custom_call.1} parent=5 // pred_check
        _
      $region46: #{tpu_custom_call.1} parent=5 // pred_check_branch
        %331 = sbr.rel (%p328) target = $region48
      $region47: #{tpu_custom_call.1} parent=5 // pred_region
        %s332 = ssub.s32 %s22, 1
        %s333 = sand.u32 %s47, 1
        %s334 = scalar_lea.sflag [#allocation4], %s333
        %s335 = sand.u32 %s47, 1
        %s336 = smul.addr %s335, 192
        %s337 = scalar_lea.vmem [#allocation3], %s336
        // Predicated region
        $region49: #{tpu_custom_call.1} parent=47 // pred_check
          %p338 = pneg %p60
        $region50: #{tpu_custom_call.1} parent=47 // pred_check_branch
          %340 = sbr.rel (%p338) target = $region52
        $region51: #{tpu_custom_call.1} parent=47 // pred_region
          %341 = dma.done %s334, 3072
        $region52: #{tpu_custom_call.1} parent=47 // pred_fallthru
          _
        %s342 = sand.u32 %s27, 1
        %s343 = scalar_lea.sflag [#allocation7], %s342
        %s344 = sand.u32 %s115, 1
        %s345 = smul.addr %s344, 256
        %s346 = scalar_lea.vmem [#allocation6], %s345
        // Predicated region
        $region53: #{tpu_custom_call.1} parent=47 // pred_check
          %p347 = pneg %p128
        $region54: #{tpu_custom_call.1} parent=47 // pred_check_branch
          %349 = sbr.rel (%p347) target = $region56
        $region55: #{tpu_custom_call.1} parent=47 // pred_region
          %350 = dma.done %s343, 4096
        $region56: #{tpu_custom_call.1} parent=47 // pred_fallthru
          _
        %s351 = sand.u32 %s27, 1
        %s352 = scalar_lea.sflag [#allocation7], %s351
        %s353 = sand.u32 %s167, 1
        %s354 = smul.addr %s353, 256
        %s355 = scalar_lea.vmem [#allocation8], %s354
        // Predicated region
        $region57: #{tpu_custom_call.1} parent=47 // pred_check
          %p356 = pneg %p180
        $region58: #{tpu_custom_call.1} parent=47 // pred_check_branch
          %358 = sbr.rel (%p356) target = $region60
        $region59: #{tpu_custom_call.1} parent=47 // pred_region
          %359 = dma.done %s352, 4096
        $region60: #{tpu_custom_call.1} parent=47 // pred_fallthru
          _
        %s360 = sand.u32 %s47, 1
        %s361 = scalar_lea.sflag [#allocation4], %s360
        %s362 = sand.u32 %s47, 1
        %s363 = smul.addr %s362, 192
        %s364 = scalar_lea.vmem [#allocation3], %s363
        %p365 = pneg %p60
        %p366 = pneg %p57
        %p367 = pneg %p81
        %p368 = pneg %p78
        %p369 = pneg %p102
        %p370 = pneg %p99
        %s371 = sand.u32 %s27, 1
        %s372 = scalar_lea.sflag [#allocation7], %s371
        %s373 = sand.u32 %s115, 1
        %s374 = smul.addr %s373, 256
        %s375 = scalar_lea.vmem [#allocation6], %s374
        %p376 = pneg %p128
        %p377 = pneg %p125
        %s378 = smul.u32 2, %s32
        %p379 = scmp.lt.s32.totalorder %s378, 3
        %s380 = scalar_select %p379, %s378, 3
        %s381 = scalar_lea.vmem %s4, %s380
        %p382 = pneg %p154
        %p383 = pneg %p151
        %s384 = sand.u32 %s27, 1
        %s385 = scalar_lea.sflag [#allocation7], %s384
        %s386 = sand.u32 %s167, 1
        %s387 = smul.addr %s386, 256
        %s388 = scalar_lea.vmem [#allocation8], %s387
        %p389 = pneg %p180
        %p390 = pneg %p177
        %p391 = pneg %p201
        %p392 = pneg %p198
        %p393 = pneg %p227
        %p394 = pneg %p224
        %s395 = sand.u32 %s214, 1
        %s396 = scalar_lea.sflag [#allocation5], %s395
        %s397 = sand.u32 %s214, 1
        %s398 = smul.addr %s397, 192
        %s399 = scalar_lea.vmem [#allocation9], %s398
        %s400 = smul.u32 24, %s31
        %s401 = smul.u32 2, %s32
        %s402 = smul.u32 2, %s32
        %p403 = scmp.lt.s32.totalorder %s402, 3
        %s404 = scalar_select %p403, %s402, 3
        %s405 = scalar_lea.vmem %s4, %s404
        %s406 = smul.u32 2, %s32
        %s407 = smul.u32 32, %s32
        %s408 = smul.u32 24, %s31
        %p409 = scmp.eq.s32.totalorder %s32, 0
        // Predicated region
        $region61: #{tpu_custom_call.1} parent=47 // pred_check
          %p410 = pneg %p409
        $region62: #{tpu_custom_call.1} parent=47 // pred_check_branch
          %412 = sbr.rel (%p410) target = $region64
        $region63: #{tpu_custom_call.1} parent=47 // pred_region
          %v413 = vld [vmem:[%s337] sm:$0xff]
          %v414 = vld [vmem:[%s337 + $0x8] sm:$0xff]
          %v415 = vld [vmem:[%s337 + $0x10] sm:$0xff]
          %v416 = vld [vmem:[%s337 + $0x18] sm:$0xff]
          %v417 = vld [vmem:[%s337 + $0x20] sm:$0xff]
          %v418 = vld [vmem:[%s337 + $0x28] sm:$0xff]
          %v419 = vld [vmem:[%s337 + $0x30] sm:$0xff]
          %v420 = vld [vmem:[%s337 + $0x38] sm:$0xff]
          %v421 = vld [vmem:[%s337 + $0x40] sm:$0xff]
          %v422 = vld [vmem:[%s337 + $0x48] sm:$0xff]
          %v423 = vld [vmem:[%s337 + $0x50] sm:$0xff]
          %v424 = vld [vmem:[%s337 + $0x58] sm:$0xff]
          %v425 = vld [vmem:[%s337 + $0x60] sm:$0xff]
          %v426 = vld [vmem:[%s337 + $0x68] sm:$0xff]
          %v427 = vld [vmem:[%s337 + $0x70] sm:$0xff]
          %v428 = vld [vmem:[%s337 + $0x78] sm:$0xff]
          %v429 = vld [vmem:[%s337 + $0x80] sm:$0xff]
          %v430 = vld [vmem:[%s337 + $0x88] sm:$0xff]
          %v431 = vld [vmem:[%s337 + $0x90] sm:$0xff]
          %v432 = vld [vmem:[%s337 + $0x98] sm:$0xff]
          %v433 = vld [vmem:[%s337 + $0xa0] sm:$0xff]
          %v434 = vld [vmem:[%s337 + $0xa8] sm:$0xff]
          %v435 = vld [vmem:[%s337 + $0xb0] sm:$0xff]
          %v436 = vld [vmem:[%s337 + $0xb8] sm:$0xff]
          %437 = vadd.xlane.f32.xlu0 %v413
          %v438 = vpop.xlane.xlu0 %437
          %439 = vadd.xlane.f32.xlu0 %v414
          %v440 = vpop.xlane.xlu0 %439
          %441 = vadd.xlane.f32.xlu0 %v415
          %v442 = vpop.xlane.xlu0 %441
          %443 = vadd.xlane.f32.xlu0 %v416
          %v444 = vpop.xlane.xlu0 %443
          %445 = vadd.xlane.f32.xlu0 %v417
          %v446 = vpop.xlane.xlu0 %445
          %447 = vadd.xlane.f32.xlu0 %v418
          %v448 = vpop.xlane.xlu0 %447
          %449 = vadd.xlane.f32.xlu0 %v419
          %v450 = vpop.xlane.xlu0 %449
          %451 = vadd.xlane.f32.xlu0 %v420
          %v452 = vpop.xlane.xlu0 %451
          %453 = vadd.xlane.f32.xlu0 %v421
          %v454 = vpop.xlane.xlu0 %453
          %455 = vadd.xlane.f32.xlu0 %v422
          %v456 = vpop.xlane.xlu0 %455
          %457 = vadd.xlane.f32.xlu0 %v423
          %v458 = vpop.xlane.xlu0 %457
          %459 = vadd.xlane.f32.xlu0 %v424
          %v460 = vpop.xlane.xlu0 %459
          %461 = vadd.xlane.f32.xlu0 %v425
          %v462 = vpop.xlane.xlu0 %461
          %463 = vadd.xlane.f32.xlu0 %v426
          %v464 = vpop.xlane.xlu0 %463
          %465 = vadd.xlane.f32.xlu0 %v427
          %v466 = vpop.xlane.xlu0 %465
          %467 = vadd.xlane.f32.xlu0 %v428
          %v468 = vpop.xlane.xlu0 %467
          %469 = vadd.xlane.f32.xlu0 %v429
          %v470 = vpop.xlane.xlu0 %469
          %471 = vadd.xlane.f32.xlu0 %v430
          %v472 = vpop.xlane.xlu0 %471
          %473 = vadd.xlane.f32.xlu0 %v431
          %v474 = vpop.xlane.xlu0 %473
          %475 = vadd.xlane.f32.xlu0 %v432
          %v476 = vpop.xlane.xlu0 %475
          %477 = vadd.xlane.f32.xlu0 %v433
          %v478 = vpop.xlane.xlu0 %477
          %479 = vadd.xlane.f32.xlu0 %v434
          %v480 = vpop.xlane.xlu0 %479
          %481 = vadd.xlane.f32.xlu0 %v435
          %v482 = vpop.xlane.xlu0 %481
          %483 = vadd.xlane.f32.xlu0 %v436
          %v484 = vpop.xlane.xlu0 %483
          %v485 = vrcp.pop 128.0
          %v486 = vmul.f32 %v438, %v485
          %v487 = vmul.f32 %v440, %v485
          %v488 = vmul.f32 %v442, %v485
          %v489 = vmul.f32 %v444, %v485
          %v490 = vmul.f32 %v446, %v485
          %v491 = vmul.f32 %v448, %v485
          %v492 = vmul.f32 %v450, %v485
          %v493 = vmul.f32 %v452, %v485
          %v494 = vmul.f32 %v454, %v485
          %v495 = vmul.f32 %v456, %v485
          %v496 = vmul.f32 %v458, %v485
          %v497 = vmul.f32 %v460, %v485
          %v498 = vmul.f32 %v462, %v485
          %v499 = vmul.f32 %v464, %v485
          %v500 = vmul.f32 %v466, %v485
          %v501 = vmul.f32 %v468, %v485
          %v502 = vmul.f32 %v470, %v485
          %v503 = vmul.f32 %v472, %v485
          %v504 = vmul.f32 %v474, %v485
          %v505 = vmul.f32 %v476, %v485
          %v506 = vmul.f32 %v478, %v485
          %v507 = vmul.f32 %v480, %v485
          %v508 = vmul.f32 %v482, %v485
          %v509 = vmul.f32 %v484, %v485
          %v510 = vsub.f32 %v413, %v486
          %v511 = vsub.f32 %v414, %v487
          %v512 = vsub.f32 %v415, %v488
          %v513 = vsub.f32 %v416, %v489
          %v514 = vsub.f32 %v417, %v490
          %v515 = vsub.f32 %v418, %v491
          %v516 = vsub.f32 %v419, %v492
          %v517 = vsub.f32 %v420, %v493
          %v518 = vsub.f32 %v421, %v494
          %v519 = vsub.f32 %v422, %v495
          %v520 = vsub.f32 %v423, %v496
          %v521 = vsub.f32 %v424, %v497
          %v522 = vsub.f32 %v425, %v498
          %v523 = vsub.f32 %v426, %v499
          %v524 = vsub.f32 %v427, %v500
          %v525 = vsub.f32 %v428, %v501
          %v526 = vsub.f32 %v429, %v502
          %v527 = vsub.f32 %v430, %v503
          %v528 = vsub.f32 %v431, %v504
          %v529 = vsub.f32 %v432, %v505
          %v530 = vsub.f32 %v433, %v506
          %v531 = vsub.f32 %v434, %v507
          %v532 = vsub.f32 %v435, %v508
          %v533 = vsub.f32 %v436, %v509
          %v534 = vmul.f32 %v510, %v510
          %v535 = vmul.f32 %v511, %v511
          %v536 = vmul.f32 %v512, %v512
          %v537 = vmul.f32 %v513, %v513
          %v538 = vmul.f32 %v514, %v514
          %v539 = vmul.f32 %v515, %v515
          %v540 = vmul.f32 %v516, %v516
          %v541 = vmul.f32 %v517, %v517
          %v542 = vmul.f32 %v518, %v518
          %v543 = vmul.f32 %v519, %v519
          %v544 = vmul.f32 %v520, %v520
          %v545 = vmul.f32 %v521, %v521
          %v546 = vmul.f32 %v522, %v522
          %v547 = vmul.f32 %v523, %v523
          %v548 = vmul.f32 %v524, %v524
          %v549 = vmul.f32 %v525, %v525
          %v550 = vmul.f32 %v526, %v526
          %v551 = vmul.f32 %v527, %v527
          %v552 = vmul.f32 %v528, %v528
          %v553 = vmul.f32 %v529, %v529
          %v554 = vmul.f32 %v530, %v530
          %v555 = vmul.f32 %v531, %v531
          %v556 = vmul.f32 %v532, %v532
          %v557 = vmul.f32 %v533, %v533
          %558 = vadd.xlane.f32.xlu0 %v534
          %v559 = vpop.xlane.xlu0 %558
          %560 = vadd.xlane.f32.xlu0 %v535
          %v561 = vpop.xlane.xlu0 %560
          %562 = vadd.xlane.f32.xlu0 %v536
          %v563 = vpop.xlane.xlu0 %562
          %564 = vadd.xlane.f32.xlu0 %v537
          %v565 = vpop.xlane.xlu0 %564
          %566 = vadd.xlane.f32.xlu0 %v538
          %v567 = vpop.xlane.xlu0 %566
          %568 = vadd.xlane.f32.xlu0 %v539
          %v569 = vpop.xlane.xlu0 %568
          %570 = vadd.xlane.f32.xlu0 %v540
          %v571 = vpop.xlane.xlu0 %570
          %572 = vadd.xlane.f32.xlu0 %v541
          %v573 = vpop.xlane.xlu0 %572
          %574 = vadd.xlane.f32.xlu0 %v542
          %v575 = vpop.xlane.xlu0 %574
          %576 = vadd.xlane.f32.xlu0 %v543
          %v577 = vpop.xlane.xlu0 %576
          %578 = vadd.xlane.f32.xlu0 %v544
          %v579 = vpop.xlane.xlu0 %578
          %580 = vadd.xlane.f32.xlu0 %v545
          %v581 = vpop.xlane.xlu0 %580
          %582 = vadd.xlane.f32.xlu0 %v546
          %v583 = vpop.xlane.xlu0 %582
          %584 = vadd.xlane.f32.xlu0 %v547
          %v585 = vpop.xlane.xlu0 %584
          %586 = vadd.xlane.f32.xlu0 %v548
          %v587 = vpop.xlane.xlu0 %586
          %588 = vadd.xlane.f32.xlu0 %v549
          %v589 = vpop.xlane.xlu0 %588
          %590 = vadd.xlane.f32.xlu0 %v550
          %v591 = vpop.xlane.xlu0 %590
          %592 = vadd.xlane.f32.xlu0 %v551
          %v593 = vpop.xlane.xlu0 %592
          %594 = vadd.xlane.f32.xlu0 %v552
          %v595 = vpop.xlane.xlu0 %594
          %596 = vadd.xlane.f32.xlu0 %v553
          %v597 = vpop.xlane.xlu0 %596
          %598 = vadd.xlane.f32.xlu0 %v554
          %v599 = vpop.xlane.xlu0 %598
          %600 = vadd.xlane.f32.xlu0 %v555
          %v601 = vpop.xlane.xlu0 %600
          %602 = vadd.xlane.f32.xlu0 %v556
          %v603 = vpop.xlane.xlu0 %602
          %604 = vadd.xlane.f32.xlu0 %v557
          %v605 = vpop.xlane.xlu0 %604
          %v606 = vmul.f32 %v559, 0.007874016
          %v607 = vmul.f32 %v561, 0.007874016
          %v608 = vmul.f32 %v563, 0.007874016
          %v609 = vmul.f32 %v565, 0.007874016
          %v610 = vmul.f32 %v567, 0.007874016
          %v611 = vmul.f32 %v569, 0.007874016
          %v612 = vmul.f32 %v571, 0.007874016
          %v613 = vmul.f32 %v573, 0.007874016
          %v614 = vmul.f32 %v575, 0.007874016
          %v615 = vmul.f32 %v577, 0.007874016
          %v616 = vmul.f32 %v579, 0.007874016
          %v617 = vmul.f32 %v581, 0.007874016
          %v618 = vmul.f32 %v583, 0.007874016
          %v619 = vmul.f32 %v585, 0.007874016
          %v620 = vmul.f32 %v587, 0.007874016
          %v621 = vmul.f32 %v589, 0.007874016
          %v622 = vmul.f32 %v591, 0.007874016
          %v623 = vmul.f32 %v593, 0.007874016
          %v624 = vmul.f32 %v595, 0.007874016
          %v625 = vmul.f32 %v597, 0.007874016
          %v626 = vmul.f32 %v599, 0.007874016
          %v627 = vmul.f32 %v601, 0.007874016
          %v628 = vmul.f32 %v603, 0.007874016
          %v629 = vmul.f32 %v605, 0.007874016
          %v630 = vrsqrt.pop %v606
          %v631 = vmul.f32 %v606, %v630
          %vm632 = vcmp.eq.f32.partialorder %v606, inf
          %v633 = vsel %vm632, %v606, %v631
          %vm634 = vcmp.eq.f32.partialorder %v606, 0.0
          %v635 = vand.u32 %v606, 2147483648
          %v636 = vsel %vm634, %v635, %v633
          %v637 = vrsqrt.pop %v607
          %v638 = vmul.f32 %v607, %v637
          %vm639 = vcmp.eq.f32.partialorder %v607, inf
          %v640 = vsel %vm639, %v607, %v638
          %vm641 = vcmp.eq.f32.partialorder %v607, 0.0
          %v642 = vand.u32 %v607, 2147483648
          %v643 = vsel %vm641, %v642, %v640
          %v644 = vrsqrt.pop %v608
          %v645 = vmul.f32 %v608, %v644
          %vm646 = vcmp.eq.f32.partialorder %v608, inf
          %v647 = vsel %vm646, %v608, %v645
          %vm648 = vcmp.eq.f32.partialorder %v608, 0.0
          %v649 = vand.u32 %v608, 2147483648
          %v650 = vsel %vm648, %v649, %v647
          %v651 = vrsqrt.pop %v609
          %v652 = vmul.f32 %v609, %v651
          %vm653 = vcmp.eq.f32.partialorder %v609, inf
          %v654 = vsel %vm653, %v609, %v652
          %vm655 = vcmp.eq.f32.partialorder %v609, 0.0
          %v656 = vand.u32 %v609, 2147483648
          %v657 = vsel %vm655, %v656, %v654
          %v658 = vrsqrt.pop %v610
          %v659 = vmul.f32 %v610, %v658
          %vm660 = vcmp.eq.f32.partialorder %v610, inf
          %v661 = vsel %vm660, %v610, %v659
          %vm662 = vcmp.eq.f32.partialorder %v610, 0.0
          %v663 = vand.u32 %v610, 2147483648
          %v664 = vsel %vm662, %v663, %v661
          %v665 = vrsqrt.pop %v611
          %v666 = vmul.f32 %v611, %v665
          %vm667 = vcmp.eq.f32.partialorder %v611, inf
          %v668 = vsel %vm667, %v611, %v666
          %vm669 = vcmp.eq.f32.partialorder %v611, 0.0
          %v670 = vand.u32 %v611, 2147483648
          %v671 = vsel %vm669, %v670, %v668
          %v672 = vrsqrt.pop %v612
          %v673 = vmul.f32 %v612, %v672
          %vm674 = vcmp.eq.f32.partialorder %v612, inf
          %v675 = vsel %vm674, %v612, %v673
          %vm676 = vcmp.eq.f32.partialorder %v612, 0.0
          %v677 = vand.u32 %v612, 2147483648
          %v678 = vsel %vm676, %v677, %v675
          %v679 = vrsqrt.pop %v613
          %v680 = vmul.f32 %v613, %v679
          %vm681 = vcmp.eq.f32.partialorder %v613, inf
          %v682 = vsel %vm681, %v613, %v680
          %vm683 = vcmp.eq.f32.partialorder %v613, 0.0
          %v684 = vand.u32 %v613, 2147483648
          %v685 = vsel %vm683, %v684, %v682
          %v686 = vrsqrt.pop %v614
          %v687 = vmul.f32 %v614, %v686
          %vm688 = vcmp.eq.f32.partialorder %v614, inf
          %v689 = vsel %vm688, %v614, %v687
          %vm690 = vcmp.eq.f32.partialorder %v614, 0.0
          %v691 = vand.u32 %v614, 2147483648
          %v692 = vsel %vm690, %v691, %v689
          %v693 = vrsqrt.pop %v615
          %v694 = vmul.f32 %v615, %v693
          %vm695 = vcmp.eq.f32.partialorder %v615, inf
          %v696 = vsel %vm695, %v615, %v694
          %vm697 = vcmp.eq.f32.partialorder %v615, 0.0
          %v698 = vand.u32 %v615, 2147483648
          %v699 = vsel %vm697, %v698, %v696
          %v700 = vrsqrt.pop %v616
          %v701 = vmul.f32 %v616, %v700
          %vm702 = vcmp.eq.f32.partialorder %v616, inf
          %v703 = vsel %vm702, %v616, %v701
          %vm704 = vcmp.eq.f32.partialorder %v616, 0.0
          %v705 = vand.u32 %v616, 2147483648
          %v706 = vsel %vm704, %v705, %v703
          %v707 = vrsqrt.pop %v617
          %v708 = vmul.f32 %v617, %v707
          %vm709 = vcmp.eq.f32.partialorder %v617, inf
          %v710 = vsel %vm709, %v617, %v708
          %vm711 = vcmp.eq.f32.partialorder %v617, 0.0
          %v712 = vand.u32 %v617, 2147483648
          %v713 = vsel %vm711, %v712, %v710
          %v714 = vrsqrt.pop %v618
          %v715 = vmul.f32 %v618, %v714
          %vm716 = vcmp.eq.f32.partialorder %v618, inf
          %v717 = vsel %vm716, %v618, %v715
          %vm718 = vcmp.eq.f32.partialorder %v618, 0.0
          %v719 = vand.u32 %v618, 2147483648
          %v720 = vsel %vm718, %v719, %v717
          %v721 = vrsqrt.pop %v619
          %v722 = vmul.f32 %v619, %v721
          %vm723 = vcmp.eq.f32.partialorder %v619, inf
          %v724 = vsel %vm723, %v619, %v722
          %vm725 = vcmp.eq.f32.partialorder %v619, 0.0
          %v726 = vand.u32 %v619, 2147483648
          %v727 = vsel %vm725, %v726, %v724
          %v728 = vrsqrt.pop %v620
          %v729 = vmul.f32 %v620, %v728
          %vm730 = vcmp.eq.f32.partialorder %v620, inf
          %v731 = vsel %vm730, %v620, %v729
          %vm732 = vcmp.eq.f32.partialorder %v620, 0.0
          %v733 = vand.u32 %v620, 2147483648
          %v734 = vsel %vm732, %v733, %v731
          %v735 = vrsqrt.pop %v621
          %v736 = vmul.f32 %v621, %v735
          %vm737 = vcmp.eq.f32.partialorder %v621, inf
          %v738 = vsel %vm737, %v621, %v736
          %vm739 = vcmp.eq.f32.partialorder %v621, 0.0
          %v740 = vand.u32 %v621, 2147483648
          %v741 = vsel %vm739, %v740, %v738
          %v742 = vrsqrt.pop %v622
          %v743 = vmul.f32 %v622, %v742
          %vm744 = vcmp.eq.f32.partialorder %v622, inf
          %v745 = vsel %vm744, %v622, %v743
          %vm746 = vcmp.eq.f32.partialorder %v622, 0.0
          %v747 = vand.u32 %v622, 2147483648
          %v748 = vsel %vm746, %v747, %v745
          %v749 = vrsqrt.pop %v623
          %v750 = vmul.f32 %v623, %v749
          %vm751 = vcmp.eq.f32.partialorder %v623, inf
          %v752 = vsel %vm751, %v623, %v750
          %vm753 = vcmp.eq.f32.partialorder %v623, 0.0
          %v754 = vand.u32 %v623, 2147483648
          %v755 = vsel %vm753, %v754, %v752
          %v756 = vrsqrt.pop %v624
          %v757 = vmul.f32 %v624, %v756
          %vm758 = vcmp.eq.f32.partialorder %v624, inf
          %v759 = vsel %vm758, %v624, %v757
          %vm760 = vcmp.eq.f32.partialorder %v624, 0.0
          %v761 = vand.u32 %v624, 2147483648
          %v762 = vsel %vm760, %v761, %v759
          %v763 = vrsqrt.pop %v625
          %v764 = vmul.f32 %v625, %v763
          %vm765 = vcmp.eq.f32.partialorder %v625, inf
          %v766 = vsel %vm765, %v625, %v764
          %vm767 = vcmp.eq.f32.partialorder %v625, 0.0
          %v768 = vand.u32 %v625, 2147483648
          %v769 = vsel %vm767, %v768, %v766
          %v770 = vrsqrt.pop %v626
          %v771 = vmul.f32 %v626, %v770
          %vm772 = vcmp.eq.f32.partialorder %v626, inf
          %v773 = vsel %vm772, %v626, %v771
          %vm774 = vcmp.eq.f32.partialorder %v626, 0.0
          %v775 = vand.u32 %v626, 2147483648
          %v776 = vsel %vm774, %v775, %v773
          %v777 = vrsqrt.pop %v627
          %v778 = vmul.f32 %v627, %v777
          %vm779 = vcmp.eq.f32.partialorder %v627, inf
          %v780 = vsel %vm779, %v627, %v778
          %vm781 = vcmp.eq.f32.partialorder %v627, 0.0
          %v782 = vand.u32 %v627, 2147483648
          %v783 = vsel %vm781, %v782, %v780
          %v784 = vrsqrt.pop %v628
          %v785 = vmul.f32 %v628, %v784
          %vm786 = vcmp.eq.f32.partialorder %v628, inf
          %v787 = vsel %vm786, %v628, %v785
          %vm788 = vcmp.eq.f32.partialorder %v628, 0.0
          %v789 = vand.u32 %v628, 2147483648
          %v790 = vsel %vm788, %v789, %v787
          %v791 = vrsqrt.pop %v629
          %v792 = vmul.f32 %v629, %v791
          %vm793 = vcmp.eq.f32.partialorder %v629, inf
          %v794 = vsel %vm793, %v629, %v792
          %vm795 = vcmp.eq.f32.partialorder %v629, 0.0
          %v796 = vand.u32 %v629, 2147483648
          %v797 = vsel %vm795, %v796, %v794
          %v798 = vadd.f32 %v636, 1e-06
          %v799 = vadd.f32 %v643, 1e-06
          %v800 = vadd.f32 %v650, 1e-06
          %v801 = vadd.f32 %v657, 1e-06
          %v802 = vadd.f32 %v664, 1e-06
          %v803 = vadd.f32 %v671, 1e-06
          %v804 = vadd.f32 %v678, 1e-06
          %v805 = vadd.f32 %v685, 1e-06
          %v806 = vadd.f32 %v692, 1e-06
          %v807 = vadd.f32 %v699, 1e-06
          %v808 = vadd.f32 %v706, 1e-06
          %v809 = vadd.f32 %v713, 1e-06
          %v810 = vadd.f32 %v720, 1e-06
          %v811 = vadd.f32 %v727, 1e-06
          %v812 = vadd.f32 %v734, 1e-06
          %v813 = vadd.f32 %v741, 1e-06
          %v814 = vadd.f32 %v748, 1e-06
          %v815 = vadd.f32 %v755, 1e-06
          %v816 = vadd.f32 %v762, 1e-06
          %v817 = vadd.f32 %v769, 1e-06
          %v818 = vadd.f32 %v776, 1e-06
          %v819 = vadd.f32 %v783, 1e-06
          %v820 = vadd.f32 %v790, 1e-06
          %v821 = vadd.f32 %v797, 1e-06
          %v822 = vrcp.pop %v798
          %v823 = vmul.f32 1.0, %v822
          %v824 = vrcp.pop %v799
          %v825 = vmul.f32 1.0, %v824
          %v826 = vrcp.pop %v800
          %v827 = vmul.f32 1.0, %v826
          %v828 = vrcp.pop %v801
          %v829 = vmul.f32 1.0, %v828
          %v830 = vrcp.pop %v802
          %v831 = vmul.f32 1.0, %v830
          %v832 = vrcp.pop %v803
          %v833 = vmul.f32 1.0, %v832
          %v834 = vrcp.pop %v804
          %v835 = vmul.f32 1.0, %v834
          %v836 = vrcp.pop %v805
          %v837 = vmul.f32 1.0, %v836
          %v838 = vrcp.pop %v806
          %v839 = vmul.f32 1.0, %v838
          %v840 = vrcp.pop %v807
          %v841 = vmul.f32 1.0, %v840
          %v842 = vrcp.pop %v808
          %v843 = vmul.f32 1.0, %v842
          %v844 = vrcp.pop %v809
          %v845 = vmul.f32 1.0, %v844
          %v846 = vrcp.pop %v810
          %v847 = vmul.f32 1.0, %v846
          %v848 = vrcp.pop %v811
          %v849 = vmul.f32 1.0, %v848
          %v850 = vrcp.pop %v812
          %v851 = vmul.f32 1.0, %v850
          %v852 = vrcp.pop %v813
          %v853 = vmul.f32 1.0, %v852
          %v854 = vrcp.pop %v814
          %v855 = vmul.f32 1.0, %v854
          %v856 = vrcp.pop %v815
          %v857 = vmul.f32 1.0, %v856
          %v858 = vrcp.pop %v816
          %v859 = vmul.f32 1.0, %v858
          %v860 = vrcp.pop %v817
          %v861 = vmul.f32 1.0, %v860
          %v862 = vrcp.pop %v818
          %v863 = vmul.f32 1.0, %v862
          %v864 = vrcp.pop %v819
          %v865 = vmul.f32 1.0, %v864
          %v866 = vrcp.pop %v820
          %v867 = vmul.f32 1.0, %v866
          %v868 = vrcp.pop %v821
          %v869 = vmul.f32 1.0, %v868
          %v870 = vld [vmem:[%s1] sm:$0x1]
          %v871 = vmul.f32 %v510, %v823
          %v872 = vmul.f32 %v511, %v825
          %v873 = vmul.f32 %v512, %v827
          %v874 = vmul.f32 %v513, %v829
          %v875 = vmul.f32 %v514, %v831
          %v876 = vmul.f32 %v515, %v833
          %v877 = vmul.f32 %v516, %v835
          %v878 = vmul.f32 %v517, %v837
          %v879 = vmul.f32 %v518, %v839
          %v880 = vmul.f32 %v519, %v841
          %v881 = vmul.f32 %v520, %v843
          %v882 = vmul.f32 %v521, %v845
          %v883 = vmul.f32 %v522, %v847
          %v884 = vmul.f32 %v523, %v849
          %v885 = vmul.f32 %v524, %v851
          %v886 = vmul.f32 %v525, %v853
          %v887 = vmul.f32 %v526, %v855
          %v888 = vmul.f32 %v527, %v857
          %v889 = vmul.f32 %v528, %v859
          %v890 = vmul.f32 %v529, %v861
          %v891 = vmul.f32 %v530, %v863
          %v892 = vmul.f32 %v531, %v865
          %v893 = vmul.f32 %v532, %v867
          %v894 = vmul.f32 %v533, %v869
          %v896 = vlaneseq
          %v897 = vshrl.u32 %v896, 7
          %v898 = vsub.s32 0, %v897
          %v899 = vrot.slane %v870, %v898
          %v901 = vmul.f32 %v899, %v871
          %v902 = vmul.f32 %v899, %v872
          %v903 = vmul.f32 %v899, %v873
          %v904 = vmul.f32 %v899, %v874
          %v905 = vmul.f32 %v899, %v875
          %v906 = vmul.f32 %v899, %v876
          %v907 = vmul.f32 %v899, %v877
          %v908 = vmul.f32 %v899, %v878
          %v909 = vmul.f32 %v899, %v879
          %v910 = vmul.f32 %v899, %v880
          %v911 = vmul.f32 %v899, %v881
          %v912 = vmul.f32 %v899, %v882
          %v913 = vmul.f32 %v899, %v883
          %v914 = vmul.f32 %v899, %v884
          %v915 = vmul.f32 %v899, %v885
          %v916 = vmul.f32 %v899, %v886
          %v917 = vmul.f32 %v899, %v887
          %v918 = vmul.f32 %v899, %v888
          %v919 = vmul.f32 %v899, %v889
          %v920 = vmul.f32 %v899, %v890
          %v921 = vmul.f32 %v899, %v891
          %v922 = vmul.f32 %v899, %v892
          %v923 = vmul.f32 %v899, %v893
          %v924 = vmul.f32 %v899, %v894
          %v925 = vld [vmem:[%s2] sm:$0x1]
          %v927 = vlaneseq
          %v928 = vshrl.u32 %v927, 7
          %v929 = vsub.s32 0, %v928
          %v930 = vrot.slane %v925, %v929
          %v932 = vadd.f32 %v901, %v930
          %v933 = vadd.f32 %v902, %v930
          %v934 = vadd.f32 %v903, %v930
          %v935 = vadd.f32 %v904, %v930
          %v936 = vadd.f32 %v905, %v930
          %v937 = vadd.f32 %v906, %v930
          %v938 = vadd.f32 %v907, %v930
          %v939 = vadd.f32 %v908, %v930
          %v940 = vadd.f32 %v909, %v930
          %v941 = vadd.f32 %v910, %v930
          %v942 = vadd.f32 %v911, %v930
          %v943 = vadd.f32 %v912, %v930
          %v944 = vadd.f32 %v913, %v930
          %v945 = vadd.f32 %v914, %v930
          %v946 = vadd.f32 %v915, %v930
          %v947 = vadd.f32 %v916, %v930
          %v948 = vadd.f32 %v917, %v930
          %v949 = vadd.f32 %v918, %v930
          %v950 = vadd.f32 %v919, %v930
          %v951 = vadd.f32 %v920, %v930
          %v952 = vadd.f32 %v921, %v930
          %v953 = vadd.f32 %v922, %v930
          %v954 = vadd.f32 %v923, %v930
          %v955 = vadd.f32 %v924, %v930
          %956 = vst [vmem:[#allocation2] sm:$0xff] %v932
          %957 = vst [vmem:[#allocation2 + $0x8] sm:$0xff] %v933
          %958 = vst [vmem:[#allocation2 + $0x10] sm:$0xff] %v934
          %959 = vst [vmem:[#allocation2 + $0x18] sm:$0xff] %v935
          %960 = vst [vmem:[#allocation2 + $0x20] sm:$0xff] %v936
          %961 = vst [vmem:[#allocation2 + $0x28] sm:$0xff] %v937
          %962 = vst [vmem:[#allocation2 + $0x30] sm:$0xff] %v938
          %963 = vst [vmem:[#allocation2 + $0x38] sm:$0xff] %v939
          %964 = vst [vmem:[#allocation2 + $0x40] sm:$0xff] %v940
          %965 = vst [vmem:[#allocation2 + $0x48] sm:$0xff] %v941
          %966 = vst [vmem:[#allocation2 + $0x50] sm:$0xff] %v942
          %967 = vst [vmem:[#allocation2 + $0x58] sm:$0xff] %v943
          %968 = vst [vmem:[#allocation2 + $0x60] sm:$0xff] %v944
          %969 = vst [vmem:[#allocation2 + $0x68] sm:$0xff] %v945
          %970 = vst [vmem:[#allocation2 + $0x70] sm:$0xff] %v946
          %971 = vst [vmem:[#allocation2 + $0x78] sm:$0xff] %v947
          %972 = vst [vmem:[#allocation2 + $0x80] sm:$0xff] %v948
          %973 = vst [vmem:[#allocation2 + $0x88] sm:$0xff] %v949
          %974 = vst [vmem:[#allocation2 + $0x90] sm:$0xff] %v950
          %975 = vst [vmem:[#allocation2 + $0x98] sm:$0xff] %v951
          %976 = vst [vmem:[#allocation2 + $0xa0] sm:$0xff] %v952
          %977 = vst [vmem:[#allocation2 + $0xa8] sm:$0xff] %v953
          %978 = vst [vmem:[#allocation2 + $0xb0] sm:$0xff] %v954
          %979 = vst [vmem:[#allocation2 + $0xb8] sm:$0xff] %v955
          %v980 = vld [vmem:[%s6] sm:$0x1]
          %v982 = vlaneseq
          %v983 = vshrl.u32 %v982, 7
          %v984 = vsub.s32 0, %v983
          %v985 = vrot.slane %v980, %v984
          %v987 = vadd.f32 %v413, %v985
          %v988 = vadd.f32 %v414, %v985
          %v989 = vadd.f32 %v415, %v985
          %v990 = vadd.f32 %v416, %v985
          %v991 = vadd.f32 %v417, %v985
          %v992 = vadd.f32 %v418, %v985
          %v993 = vadd.f32 %v419, %v985
          %v994 = vadd.f32 %v420, %v985
          %v995 = vadd.f32 %v421, %v985
          %v996 = vadd.f32 %v422, %v985
          %v997 = vadd.f32 %v423, %v985
          %v998 = vadd.f32 %v424, %v985
          %v999 = vadd.f32 %v425, %v985
          %v1000 = vadd.f32 %v426, %v985
          %v1001 = vadd.f32 %v427, %v985
          %v1002 = vadd.f32 %v428, %v985
          %v1003 = vadd.f32 %v429, %v985
          %v1004 = vadd.f32 %v430, %v985
          %v1005 = vadd.f32 %v431, %v985
          %v1006 = vadd.f32 %v432, %v985
          %v1007 = vadd.f32 %v433, %v985
          %v1008 = vadd.f32 %v434, %v985
          %v1009 = vadd.f32 %v435, %v985
          %v1010 = vadd.f32 %v436, %v985
          %1011 = vst [vmem:[%s399] sm:$0xff] %v987
          %1012 = vst [vmem:[%s399 + $0x8] sm:$0xff] %v988
          %1013 = vst [vmem:[%s399 + $0x10] sm:$0xff] %v989
          %1014 = vst [vmem:[%s399 + $0x18] sm:$0xff] %v990
          %1015 = vst [vmem:[%s399 + $0x20] sm:$0xff] %v991
          %1016 = vst [vmem:[%s399 + $0x28] sm:$0xff] %v992
          %1017 = vst [vmem:[%s399 + $0x30] sm:$0xff] %v993
          %1018 = vst [vmem:[%s399 + $0x38] sm:$0xff] %v994
          %1019 = vst [vmem:[%s399 + $0x40] sm:$0xff] %v995
          %1020 = vst [vmem:[%s399 + $0x48] sm:$0xff] %v996
          %1021 = vst [vmem:[%s399 + $0x50] sm:$0xff] %v997
          %1022 = vst [vmem:[%s399 + $0x58] sm:$0xff] %v998
          %1023 = vst [vmem:[%s399 + $0x60] sm:$0xff] %v999
          %1024 = vst [vmem:[%s399 + $0x68] sm:$0xff] %v1000
          %1025 = vst [vmem:[%s399 + $0x70] sm:$0xff] %v1001
          %1026 = vst [vmem:[%s399 + $0x78] sm:$0xff] %v1002
          %1027 = vst [vmem:[%s399 + $0x80] sm:$0xff] %v1003
          %1028 = vst [vmem:[%s399 + $0x88] sm:$0xff] %v1004
          %1029 = vst [vmem:[%s399 + $0x90] sm:$0xff] %v1005
          %1030 = vst [vmem:[%s399 + $0x98] sm:$0xff] %v1006
          %1031 = vst [vmem:[%s399 + $0xa0] sm:$0xff] %v1007
          %1032 = vst [vmem:[%s399 + $0xa8] sm:$0xff] %v1008
          %1033 = vst [vmem:[%s399 + $0xb0] sm:$0xff] %v1009
          %1034 = vst [vmem:[%s399 + $0xb8] sm:$0xff] %v1010
        $region64: #{tpu_custom_call.1} parent=47 // pred_fallthru
          _
        %v1035 = vld [vmem:[#allocation2] sm:$0xff]
        %v1036 = vld [vmem:[#allocation2 + $0x8] sm:$0xff]
        %v1037 = vld [vmem:[#allocation2 + $0x10] sm:$0xff]
        %v1038 = vld [vmem:[#allocation2 + $0x18] sm:$0xff]
        %v1039 = vld [vmem:[#allocation2 + $0x20] sm:$0xff]
        %v1040 = vld [vmem:[#allocation2 + $0x28] sm:$0xff]
        %v1041 = vld [vmem:[#allocation2 + $0x30] sm:$0xff]
        %v1042 = vld [vmem:[#allocation2 + $0x38] sm:$0xff]
        %v1043 = vld [vmem:[#allocation2 + $0x40] sm:$0xff]
        %v1044 = vld [vmem:[#allocation2 + $0x48] sm:$0xff]
        %v1045 = vld [vmem:[#allocation2 + $0x50] sm:$0xff]
        %v1046 = vld [vmem:[#allocation2 + $0x58] sm:$0xff]
        %v1047 = vld [vmem:[#allocation2 + $0x60] sm:$0xff]
        %v1048 = vld [vmem:[#allocation2 + $0x68] sm:$0xff]
        %v1049 = vld [vmem:[#allocation2 + $0x70] sm:$0xff]
        %v1050 = vld [vmem:[#allocation2 + $0x78] sm:$0xff]
        %v1051 = vld [vmem:[#allocation2 + $0x80] sm:$0xff]
        %v1052 = vld [vmem:[#allocation2 + $0x88] sm:$0xff]
        %v1053 = vld [vmem:[#allocation2 + $0x90] sm:$0xff]
        %v1054 = vld [vmem:[#allocation2 + $0x98] sm:$0xff]
        %v1055 = vld [vmem:[#allocation2 + $0xa0] sm:$0xff]
        %v1056 = vld [vmem:[#allocation2 + $0xa8] sm:$0xff]
        %v1057 = vld [vmem:[#allocation2 + $0xb0] sm:$0xff]
        %v1058 = vld [vmem:[#allocation2 + $0xb8] sm:$0xff]
        %v1059 = vld [vmem:[%s346] sm:$0xff]
        %v1060 = vld [vmem:[%s346 + $0x8] sm:$0xff]
        %v1061 = vld [vmem:[%s346 + $0x10] sm:$0xff]
        %v1062 = vld [vmem:[%s346 + $0x18] sm:$0xff]
        %v1063 = vld [vmem:[%s346 + $0x20] sm:$0xff]
        %v1064 = vld [vmem:[%s346 + $0x28] sm:$0xff]
        %v1065 = vld [vmem:[%s346 + $0x30] sm:$0xff]
        %v1066 = vld [vmem:[%s346 + $0x38] sm:$0xff]
        %v1067 = vld [vmem:[%s346 + $0x40] sm:$0xff]
        %v1068 = vld [vmem:[%s346 + $0x48] sm:$0xff]
        %v1069 = vld [vmem:[%s346 + $0x50] sm:$0xff]
        %v1070 = vld [vmem:[%s346 + $0x58] sm:$0xff]
        %v1071 = vld [vmem:[%s346 + $0x60] sm:$0xff]
        %v1072 = vld [vmem:[%s346 + $0x68] sm:$0xff]
        %v1073 = vld [vmem:[%s346 + $0x70] sm:$0xff]
        %v1074 = vld [vmem:[%s346 + $0x78] sm:$0xff]
        %v1075 = vld [vmem:[%s346 + $0x80] sm:$0xff]
        %v1076 = vld [vmem:[%s346 + $0x88] sm:$0xff]
        %v1077 = vld [vmem:[%s346 + $0x90] sm:$0xff]
        %v1078 = vld [vmem:[%s346 + $0x98] sm:$0xff]
        %v1079 = vld [vmem:[%s346 + $0xa0] sm:$0xff]
        %v1080 = vld [vmem:[%s346 + $0xa8] sm:$0xff]
        %v1081 = vld [vmem:[%s346 + $0xb0] sm:$0xff]
        %v1082 = vld [vmem:[%s346 + $0xb8] sm:$0xff]
        %v1083 = vld [vmem:[%s346 + $0xc0] sm:$0xff]
        %v1084 = vld [vmem:[%s346 + $0xc8] sm:$0xff]
        %v1085 = vld [vmem:[%s346 + $0xd0] sm:$0xff]
        %v1086 = vld [vmem:[%s346 + $0xd8] sm:$0xff]
        %v1087 = vld [vmem:[%s346 + $0xe0] sm:$0xff]
        %v1088 = vld [vmem:[%s346 + $0xe8] sm:$0xff]
        %v1089 = vld [vmem:[%s346 + $0xf0] sm:$0xff]
        %v1090 = vld [vmem:[%s346 + $0xf8] sm:$0xff]
        %v1091 = vld [vmem:[%s405] sm:$0x3]
        %v1093 = vlaneseq
        %v1094 = vshrl.u32 %v1093, 7
        %v1095 = vsub.s32 0, %v1094
        %v1096 = vrot.slane %v1091, %v1095
        %v1097 = vlaneseq
        %v1098 = vshrl.u32 %v1097, 7
        %v1099 = vsub.s32 1, %v1098
        %v1100 = vrot.slane %v1091, %v1099
        %1103 = vmatprep.subr.mxu0 %v1090
        %1104 = vmatpush1.msra.mxu0 %v1089
        %1105 = vmatprep.subr.mxu0 %v1088
        %1106 = vmatpush1.msra.mxu0 %v1087
        %1107 = vmatprep.subr.mxu0 %v1086
        %1108 = vmatpush1.msra.mxu0 %v1085
        %1109 = vmatprep.subr.mxu0 %v1084
        %1110 = vmatpush1.msra.mxu0 %v1083
        %1111 = vmatprep.subr.mxu0 %v1082
        %1112 = vmatpush1.msra.mxu0 %v1081
        %1113 = vmatprep.subr.mxu0 %v1080
        %1114 = vmatpush1.msra.mxu0 %v1079
        %1115 = vmatprep.subr.mxu0 %v1078
        %1116 = vmatpush1.msra.mxu0 %v1077
        %1117 = vmatprep.subr.mxu0 %v1076
        %1118 = vmatpush1.msra.mxu0 %v1075
        %1119 = vmatprep.subr.mxu0 %v1074
        %1120 = vmatpush1.msra.mxu0 %v1073
        %1121 = vmatprep.subr.mxu0 %v1072
        %1122 = vmatpush1.msra.mxu0 %v1071
        %1123 = vmatprep.subr.mxu0 %v1070
        %1124 = vmatpush1.msra.mxu0 %v1069
        %1125 = vmatprep.subr.mxu0 %v1068
        %1126 = vmatpush1.msra.mxu0 %v1067
        %1127 = vmatprep.subr.mxu0 %v1066
        %1128 = vmatpush1.msra.mxu0 %v1065
        %1129 = vmatprep.subr.mxu0 %v1064
        %1130 = vmatpush1.msra.mxu0 %v1063
        %1131 = vmatprep.subr.mxu0 %v1062
        %1132 = vmatpush1.msra.mxu0 %v1061
        %1133 = vmatprep.subr.mxu0 %v1060
        %1134 = vmatpush1.msra.mxu0 %v1059
        %1135 = vmatprep.subr.mxu0 0.0
        %1136 = vmatpush2.msra.mxu0 0.0
        %1137 = vmatprep.subr.mxu0 0.0
        %1138 = vmatpush2.msra.mxu0 0.0
        %1139 = vmatprep.subr.mxu0 0.0
        %1140 = vmatpush2.msra.mxu0 0.0
        %1141 = vmatprep.subr.mxu0 0.0
        %1142 = vmatpush2.msra.mxu0 0.0
        %1143 = vmatprep.subr.mxu0 0.0
        %1144 = vmatpush2.msra.mxu0 0.0
        %1145 = vmatprep.subr.mxu0 0.0
        %1146 = vmatpush2.msra.mxu0 0.0
        %1147 = vmatprep.subr.mxu0 0.0
        %1148 = vmatpush2.msra.mxu0 0.0
        %1149 = vmatprep.subr.mxu0 0.0
        %1150 = vmatpush2.msra.mxu0 0.0
        %1151 = vmatprep.subr.mxu0 0.0
        %1152 = vmatpush2.msra.mxu0 0.0
        %1153 = vmatprep.subr.mxu0 0.0
        %1154 = vmatpush2.msra.mxu0 0.0
        %1155 = vmatprep.subr.mxu0 0.0
        %1156 = vmatpush2.msra.mxu0 0.0
        %1157 = vmatprep.subr.mxu0 0.0
        %1158 = vmatpush2.msra.mxu0 0.0
        %1159 = vmatprep.subr.mxu0 0.0
        %1160 = vmatpush2.msra.mxu0 0.0
        %1161 = vmatprep.subr.mxu0 0.0
        %1162 = vmatpush2.msra.mxu0 0.0
        %1163 = vmatprep.subr.mxu0 0.0
        %1164 = vmatpush2.msra.mxu0 0.0
        %1165 = vmatprep.subr.mxu0 0.0
        %1166 = vmatpush2.msra.mxu0 0.0
        %1167 = vmatprep.mubr.f32.mxu0 0.0
        %1168 = vmatmul.mubr.f32.gmra.mxu0 %v1035
        %v1169 = vpop.f32.mrf.mxu0
        %v1170 = vadd.f32 %v1096, %v1169
        %v1171 = vpop.f32.mrf.mxu0
        %v1172 = vadd.f32 %v1100, %v1171
        %1173 = vmatprep.mubr.f32.mxu0 0.0
        %1174 = vmatmul.mubr.f32.gmra.mxu0 %v1036
        %v1175 = vpop.f32.mrf.mxu0
        %v1176 = vadd.f32 %v1096, %v1175
        %v1177 = vpop.f32.mrf.mxu0
        %v1178 = vadd.f32 %v1100, %v1177
        %1179 = vmatprep.mubr.f32.mxu0 0.0
        %1180 = vmatmul.mubr.f32.gmra.mxu0 %v1037
        %v1181 = vpop.f32.mrf.mxu0
        %v1182 = vadd.f32 %v1096, %v1181
        %v1183 = vpop.f32.mrf.mxu0
        %v1184 = vadd.f32 %v1100, %v1183
        %1185 = vmatprep.mubr.f32.mxu0 0.0
        %1186 = vmatmul.mubr.f32.gmra.mxu0 %v1038
        %v1187 = vpop.f32.mrf.mxu0
        %v1188 = vadd.f32 %v1096, %v1187
        %v1189 = vpop.f32.mrf.mxu0
        %v1190 = vadd.f32 %v1100, %v1189
        %1191 = vmatprep.mubr.f32.mxu0 0.0
        %1192 = vmatmul.mubr.f32.gmra.mxu0 %v1039
        %v1193 = vpop.f32.mrf.mxu0
        %v1194 = vadd.f32 %v1096, %v1193
        %v1195 = vpop.f32.mrf.mxu0
        %v1196 = vadd.f32 %v1100, %v1195
        %1197 = vmatprep.mubr.f32.mxu0 0.0
        %1198 = vmatmul.mubr.f32.gmra.mxu0 %v1040
        %v1199 = vpop.f32.mrf.mxu0
        %v1200 = vadd.f32 %v1096, %v1199
        %v1201 = vpop.f32.mrf.mxu0
        %v1202 = vadd.f32 %v1100, %v1201
        %1203 = vmatprep.mubr.f32.mxu0 0.0
        %1204 = vmatmul.mubr.f32.gmra.mxu0 %v1041
        %v1205 = vpop.f32.mrf.mxu0
        %v1206 = vadd.f32 %v1096, %v1205
        %v1207 = vpop.f32.mrf.mxu0
        %v1208 = vadd.f32 %v1100, %v1207
        %1209 = vmatprep.mubr.f32.mxu0 0.0
        %1210 = vmatmul.mubr.f32.gmra.mxu0 %v1042
        %v1211 = vpop.f32.mrf.mxu0
        %v1212 = vadd.f32 %v1096, %v1211
        %v1213 = vpop.f32.mrf.mxu0
        %v1214 = vadd.f32 %v1100, %v1213
        %1215 = vmatprep.mubr.f32.mxu0 0.0
        %1216 = vmatmul.mubr.f32.gmra.mxu0 %v1043
        %v1217 = vpop.f32.mrf.mxu0
        %v1218 = vadd.f32 %v1096, %v1217
        %v1219 = vpop.f32.mrf.mxu0
        %v1220 = vadd.f32 %v1100, %v1219
        %1221 = vmatprep.mubr.f32.mxu0 0.0
        %1222 = vmatmul.mubr.f32.gmra.mxu0 %v1044
        %v1223 = vpop.f32.mrf.mxu0
        %v1224 = vadd.f32 %v1096, %v1223
        %v1225 = vpop.f32.mrf.mxu0
        %v1226 = vadd.f32 %v1100, %v1225
        %1227 = vmatprep.mubr.f32.mxu0 0.0
        %1228 = vmatmul.mubr.f32.gmra.mxu0 %v1045
        %v1229 = vpop.f32.mrf.mxu0
        %v1230 = vadd.f32 %v1096, %v1229
        %v1231 = vpop.f32.mrf.mxu0
        %v1232 = vadd.f32 %v1100, %v1231
        %1233 = vmatprep.mubr.f32.mxu0 0.0
        %1234 = vmatmul.mubr.f32.gmra.mxu0 %v1046
        %v1235 = vpop.f32.mrf.mxu0
        %v1236 = vadd.f32 %v1096, %v1235
        %v1237 = vpop.f32.mrf.mxu0
        %v1238 = vadd.f32 %v1100, %v1237
        %1239 = vmatprep.mubr.f32.mxu0 0.0
        %1240 = vmatmul.mubr.f32.gmra.mxu0 %v1047
        %v1241 = vpop.f32.mrf.mxu0
        %v1242 = vadd.f32 %v1096, %v1241
        %v1243 = vpop.f32.mrf.mxu0
        %v1244 = vadd.f32 %v1100, %v1243
        %1245 = vmatprep.mubr.f32.mxu0 0.0
        %1246 = vmatmul.mubr.f32.gmra.mxu0 %v1048
        %v1247 = vpop.f32.mrf.mxu0
        %v1248 = vadd.f32 %v1096, %v1247
        %v1249 = vpop.f32.mrf.mxu0
        %v1250 = vadd.f32 %v1100, %v1249
        %1251 = vmatprep.mubr.f32.mxu0 0.0
        %1252 = vmatmul.mubr.f32.gmra.mxu0 %v1049
        %v1253 = vpop.f32.mrf.mxu0
        %v1254 = vadd.f32 %v1096, %v1253
        %v1255 = vpop.f32.mrf.mxu0
        %v1256 = vadd.f32 %v1100, %v1255
        %1257 = vmatprep.mubr.f32.mxu0 0.0
        %1258 = vmatmul.mubr.f32.gmra.mxu0 %v1050
        %v1259 = vpop.f32.mrf.mxu0
        %v1260 = vadd.f32 %v1096, %v1259
        %v1261 = vpop.f32.mrf.mxu0
        %v1262 = vadd.f32 %v1100, %v1261
        %1263 = vmatprep.mubr.f32.mxu0 0.0
        %1264 = vmatmul.mubr.f32.gmra.mxu0 %v1051
        %v1265 = vpop.f32.mrf.mxu0
        %v1266 = vadd.f32 %v1096, %v1265
        %v1267 = vpop.f32.mrf.mxu0
        %v1268 = vadd.f32 %v1100, %v1267
        %1269 = vmatprep.mubr.f32.mxu0 0.0
        %1270 = vmatmul.mubr.f32.gmra.mxu0 %v1052
        %v1271 = vpop.f32.mrf.mxu0
        %v1272 = vadd.f32 %v1096, %v1271
        %v1273 = vpop.f32.mrf.mxu0
        %v1274 = vadd.f32 %v1100, %v1273
        %1275 = vmatprep.mubr.f32.mxu0 0.0
        %1276 = vmatmul.mubr.f32.gmra.mxu0 %v1053
        %v1277 = vpop.f32.mrf.mxu0
        %v1278 = vadd.f32 %v1096, %v1277
        %v1279 = vpop.f32.mrf.mxu0
        %v1280 = vadd.f32 %v1100, %v1279
        %1281 = vmatprep.mubr.f32.mxu0 0.0
        %1282 = vmatmul.mubr.f32.gmra.mxu0 %v1054
        %v1283 = vpop.f32.mrf.mxu0
        %v1284 = vadd.f32 %v1096, %v1283
        %v1285 = vpop.f32.mrf.mxu0
        %v1286 = vadd.f32 %v1100, %v1285
        %1287 = vmatprep.mubr.f32.mxu0 0.0
        %1288 = vmatmul.mubr.f32.gmra.mxu0 %v1055
        %v1289 = vpop.f32.mrf.mxu0
        %v1290 = vadd.f32 %v1096, %v1289
        %v1291 = vpop.f32.mrf.mxu0
        %v1292 = vadd.f32 %v1100, %v1291
        %1293 = vmatprep.mubr.f32.mxu0 0.0
        %1294 = vmatmul.mubr.f32.gmra.mxu0 %v1056
        %v1295 = vpop.f32.mrf.mxu0
        %v1296 = vadd.f32 %v1096, %v1295
        %v1297 = vpop.f32.mrf.mxu0
        %v1298 = vadd.f32 %v1100, %v1297
        %1299 = vmatprep.mubr.f32.mxu0 0.0
        %1300 = vmatmul.mubr.f32.gmra.mxu0 %v1057
        %v1301 = vpop.f32.mrf.mxu0
        %v1302 = vadd.f32 %v1096, %v1301
        %v1303 = vpop.f32.mrf.mxu0
        %v1304 = vadd.f32 %v1100, %v1303
        %1305 = vmatprep.mubr.f32.mxu0 0.0
        %1306 = vmatmul.mubr.f32.gmra.mxu0 %v1058
        %v1307 = vpop.f32.mrf.mxu0
        %v1308 = vadd.f32 %v1096, %v1307
        %v1309 = vpop.f32.mrf.mxu0
        %v1310 = vadd.f32 %v1100, %v1309
        %1311 = vdwg.mxu0
        %v1312 = vmax.f32 %v1170, 0.0
        %v1313 = vmax.f32 %v1172, 0.0
        %v1314 = vmax.f32 %v1176, 0.0
        %v1315 = vmax.f32 %v1178, 0.0
        %v1316 = vmax.f32 %v1182, 0.0
        %v1317 = vmax.f32 %v1184, 0.0
        %v1318 = vmax.f32 %v1188, 0.0
        %v1319 = vmax.f32 %v1190, 0.0
        %v1320 = vmax.f32 %v1194, 0.0
        %v1321 = vmax.f32 %v1196, 0.0
        %v1322 = vmax.f32 %v1200, 0.0
        %v1323 = vmax.f32 %v1202, 0.0
        %v1324 = vmax.f32 %v1206, 0.0
        %v1325 = vmax.f32 %v1208, 0.0
        %v1326 = vmax.f32 %v1212, 0.0
        %v1327 = vmax.f32 %v1214, 0.0
        %v1328 = vmax.f32 %v1218, 0.0
        %v1329 = vmax.f32 %v1220, 0.0
        %v1330 = vmax.f32 %v1224, 0.0
        %v1331 = vmax.f32 %v1226, 0.0
        %v1332 = vmax.f32 %v1230, 0.0
        %v1333 = vmax.f32 %v1232, 0.0
        %v1334 = vmax.f32 %v1236, 0.0
        %v1335 = vmax.f32 %v1238, 0.0
        %v1336 = vmax.f32 %v1242, 0.0
        %v1337 = vmax.f32 %v1244, 0.0
        %v1338 = vmax.f32 %v1248, 0.0
        %v1339 = vmax.f32 %v1250, 0.0
        %v1340 = vmax.f32 %v1254, 0.0
        %v1341 = vmax.f32 %v1256, 0.0
        %v1342 = vmax.f32 %v1260, 0.0
        %v1343 = vmax.f32 %v1262, 0.0
        %v1344 = vmax.f32 %v1266, 0.0
        %v1345 = vmax.f32 %v1268, 0.0
        %v1346 = vmax.f32 %v1272, 0.0
        %v1347 = vmax.f32 %v1274, 0.0
        %v1348 = vmax.f32 %v1278, 0.0
        %v1349 = vmax.f32 %v1280, 0.0
        %v1350 = vmax.f32 %v1284, 0.0
        %v1351 = vmax.f32 %v1286, 0.0
        %v1352 = vmax.f32 %v1290, 0.0
        %v1353 = vmax.f32 %v1292, 0.0
        %v1354 = vmax.f32 %v1296, 0.0
        %v1355 = vmax.f32 %v1298, 0.0
        %v1356 = vmax.f32 %v1302, 0.0
        %v1357 = vmax.f32 %v1304, 0.0
        %v1358 = vmax.f32 %v1308, 0.0
        %v1359 = vmax.f32 %v1310, 0.0
        %v1360 = vld [vmem:[%s399] sm:$0xff]
        %v1361 = vld [vmem:[%s399 + $0x8] sm:$0xff]
        %v1362 = vld [vmem:[%s399 + $0x10] sm:$0xff]
        %v1363 = vld [vmem:[%s399 + $0x18] sm:$0xff]
        %v1364 = vld [vmem:[%s399 + $0x20] sm:$0xff]
        %v1365 = vld [vmem:[%s399 + $0x28] sm:$0xff]
        %v1366 = vld [vmem:[%s399 + $0x30] sm:$0xff]
        %v1367 = vld [vmem:[%s399 + $0x38] sm:$0xff]
        %v1368 = vld [vmem:[%s399 + $0x40] sm:$0xff]
        %v1369 = vld [vmem:[%s399 + $0x48] sm:$0xff]
        %v1370 = vld [vmem:[%s399 + $0x50] sm:$0xff]
        %v1371 = vld [vmem:[%s399 + $0x58] sm:$0xff]
        %v1372 = vld [vmem:[%s399 + $0x60] sm:$0xff]
        %v1373 = vld [vmem:[%s399 + $0x68] sm:$0xff]
        %v1374 = vld [vmem:[%s399 + $0x70] sm:$0xff]
        %v1375 = vld [vmem:[%s399 + $0x78] sm:$0xff]
        %v1376 = vld [vmem:[%s399 + $0x80] sm:$0xff]
        %v1377 = vld [vmem:[%s399 + $0x88] sm:$0xff]
        %v1378 = vld [vmem:[%s399 + $0x90] sm:$0xff]
        %v1379 = vld [vmem:[%s399 + $0x98] sm:$0xff]
        %v1380 = vld [vmem:[%s399 + $0xa0] sm:$0xff]
        %v1381 = vld [vmem:[%s399 + $0xa8] sm:$0xff]
        %v1382 = vld [vmem:[%s399 + $0xb0] sm:$0xff]
        %v1383 = vld [vmem:[%s399 + $0xb8] sm:$0xff]
        %v1384 = vld [vmem:[%s355] sm:$0xff]
        %v1385 = vld [vmem:[%s355 + $0x8] sm:$0xff]
        %v1386 = vld [vmem:[%s355 + $0x10] sm:$0xff]
        %v1387 = vld [vmem:[%s355 + $0x18] sm:$0xff]
        %v1388 = vld [vmem:[%s355 + $0x20] sm:$0xff]
        %v1389 = vld [vmem:[%s355 + $0x28] sm:$0xff]
        %v1390 = vld [vmem:[%s355 + $0x30] sm:$0xff]
        %v1391 = vld [vmem:[%s355 + $0x38] sm:$0xff]
        %v1392 = vld [vmem:[%s355 + $0x40] sm:$0xff]
        %v1393 = vld [vmem:[%s355 + $0x48] sm:$0xff]
        %v1394 = vld [vmem:[%s355 + $0x50] sm:$0xff]
        %v1395 = vld [vmem:[%s355 + $0x58] sm:$0xff]
        %v1396 = vld [vmem:[%s355 + $0x60] sm:$0xff]
        %v1397 = vld [vmem:[%s355 + $0x68] sm:$0xff]
        %v1398 = vld [vmem:[%s355 + $0x70] sm:$0xff]
        %v1399 = vld [vmem:[%s355 + $0x78] sm:$0xff]
        %v1400 = vld [vmem:[%s355 + $0x80] sm:$0xff]
        %v1401 = vld [vmem:[%s355 + $0x88] sm:$0xff]
        %v1402 = vld [vmem:[%s355 + $0x90] sm:$0xff]
        %v1403 = vld [vmem:[%s355 + $0x98] sm:$0xff]
        %v1404 = vld [vmem:[%s355 + $0xa0] sm:$0xff]
        %v1405 = vld [vmem:[%s355 + $0xa8] sm:$0xff]
        %v1406 = vld [vmem:[%s355 + $0xb0] sm:$0xff]
        %v1407 = vld [vmem:[%s355 + $0xb8] sm:$0xff]
        %v1408 = vld [vmem:[%s355 + $0xc0] sm:$0xff]
        %v1409 = vld [vmem:[%s355 + $0xc8] sm:$0xff]
        %v1410 = vld [vmem:[%s355 + $0xd0] sm:$0xff]
        %v1411 = vld [vmem:[%s355 + $0xd8] sm:$0xff]
        %v1412 = vld [vmem:[%s355 + $0xe0] sm:$0xff]
        %v1413 = vld [vmem:[%s355 + $0xe8] sm:$0xff]
        %v1414 = vld [vmem:[%s355 + $0xf0] sm:$0xff]
        %v1415 = vld [vmem:[%s355 + $0xf8] sm:$0xff]
        %1416 = vmatprep.subr.mxu0 0.0
        %1417 = vmatpush1.msra.mxu0 %v1399
        %1418 = vmatprep.subr.mxu0 0.0
        %1419 = vmatpush1.msra.mxu0 %v1398
        %1420 = vmatprep.subr.mxu0 0.0
        %1421 = vmatpush1.msra.mxu0 %v1397
        %1422 = vmatprep.subr.mxu0 0.0
        %1423 = vmatpush1.msra.mxu0 %v1396
        %1424 = vmatprep.subr.mxu0 0.0
        %1425 = vmatpush1.msra.mxu0 %v1395
        %1426 = vmatprep.subr.mxu0 0.0
        %1427 = vmatpush1.msra.mxu0 %v1394
        %1428 = vmatprep.subr.mxu0 0.0
        %1429 = vmatpush1.msra.mxu0 %v1393
        %1430 = vmatprep.subr.mxu0 0.0
        %1431 = vmatpush1.msra.mxu0 %v1392
        %1432 = vmatprep.subr.mxu0 0.0
        %1433 = vmatpush1.msra.mxu0 %v1391
        %1434 = vmatprep.subr.mxu0 0.0
        %1435 = vmatpush1.msra.mxu0 %v1390
        %1436 = vmatprep.subr.mxu0 0.0
        %1437 = vmatpush1.msra.mxu0 %v1389
        %1438 = vmatprep.subr.mxu0 0.0
        %1439 = vmatpush1.msra.mxu0 %v1388
        %1440 = vmatprep.subr.mxu0 0.0
        %1441 = vmatpush1.msra.mxu0 %v1387
        %1442 = vmatprep.subr.mxu0 0.0
        %1443 = vmatpush1.msra.mxu0 %v1386
        %1444 = vmatprep.subr.mxu0 0.0
        %1445 = vmatpush1.msra.mxu0 %v1385
        %1446 = vmatprep.subr.mxu0 0.0
        %1447 = vmatpush1.msra.mxu0 %v1384
        %1448 = vmatprep.subr.mxu0 0.0
        %1449 = vmatpush2.msra.mxu0 %v1415
        %1450 = vmatprep.subr.mxu0 0.0
        %1451 = vmatpush2.msra.mxu0 %v1414
        %1452 = vmatprep.subr.mxu0 0.0
        %1453 = vmatpush2.msra.mxu0 %v1413
        %1454 = vmatprep.subr.mxu0 0.0
        %1455 = vmatpush2.msra.mxu0 %v1412
        %1456 = vmatprep.subr.mxu0 0.0
        %1457 = vmatpush2.msra.mxu0 %v1411
        %1458 = vmatprep.subr.mxu0 0.0
        %1459 = vmatpush2.msra.mxu0 %v1410
        %1460 = vmatprep.subr.mxu0 0.0
        %1461 = vmatpush2.msra.mxu0 %v1409
        %1462 = vmatprep.subr.mxu0 0.0
        %1463 = vmatpush2.msra.mxu0 %v1408
        %1464 = vmatprep.subr.mxu0 0.0
        %1465 = vmatpush2.msra.mxu0 %v1407
        %1466 = vmatprep.subr.mxu0 0.0
        %1467 = vmatpush2.msra.mxu0 %v1406
        %1468 = vmatprep.subr.mxu0 0.0
        %1469 = vmatpush2.msra.mxu0 %v1405
        %1470 = vmatprep.subr.mxu0 0.0
        %1471 = vmatpush2.msra.mxu0 %v1404
        %1472 = vmatprep.subr.mxu0 0.0
        %1473 = vmatpush2.msra.mxu0 %v1403
        %1474 = vmatprep.subr.mxu0 0.0
        %1475 = vmatpush2.msra.mxu0 %v1402
        %1476 = vmatprep.subr.mxu0 0.0
        %1477 = vmatpush2.msra.mxu0 %v1401
        %1478 = vmatprep.subr.mxu0 0.0
        %1479 = vmatpush2.msra.mxu0 %v1400
        %1480 = vmatprep.mubr.f32.mxu0 %v1313
        %1481 = vmatmul.mubr.f32.gmra.mxu0 %v1312
        %v1482 = vpop.f32.mrf.mxu0
        %v1483 = vadd.f32 0.0, %v1482
        %v1484 = vpop.f32.mrf.mxu0
        %1485 = vmatprep.mubr.f32.mxu0 %v1315
        %1486 = vmatmul.mubr.f32.gmra.mxu0 %v1314
        %v1487 = vpop.f32.mrf.mxu0
        %v1488 = vadd.f32 0.0, %v1487
        %v1489 = vpop.f32.mrf.mxu0
        %1490 = vmatprep.mubr.f32.mxu0 %v1317
        %1491 = vmatmul.mubr.f32.gmra.mxu0 %v1316
        %v1492 = vpop.f32.mrf.mxu0
        %v1493 = vadd.f32 0.0, %v1492
        %v1494 = vpop.f32.mrf.mxu0
        %1495 = vmatprep.mubr.f32.mxu0 %v1319
        %1496 = vmatmul.mubr.f32.gmra.mxu0 %v1318
        %v1497 = vpop.f32.mrf.mxu0
        %v1498 = vadd.f32 0.0, %v1497
        %v1499 = vpop.f32.mrf.mxu0
        %1500 = vmatprep.mubr.f32.mxu0 %v1321
        %1501 = vmatmul.mubr.f32.gmra.mxu0 %v1320
        %v1502 = vpop.f32.mrf.mxu0
        %v1503 = vadd.f32 0.0, %v1502
        %v1504 = vpop.f32.mrf.mxu0
        %1505 = vmatprep.mubr.f32.mxu0 %v1323
        %1506 = vmatmul.mubr.f32.gmra.mxu0 %v1322
        %v1507 = vpop.f32.mrf.mxu0
        %v1508 = vadd.f32 0.0, %v1507
        %v1509 = vpop.f32.mrf.mxu0
        %1510 = vmatprep.mubr.f32.mxu0 %v1325
        %1511 = vmatmul.mubr.f32.gmra.mxu0 %v1324
        %v1512 = vpop.f32.mrf.mxu0
        %v1513 = vadd.f32 0.0, %v1512
        %v1514 = vpop.f32.mrf.mxu0
        %1515 = vmatprep.mubr.f32.mxu0 %v1327
        %1516 = vmatmul.mubr.f32.gmra.mxu0 %v1326
        %v1517 = vpop.f32.mrf.mxu0
        %v1518 = vadd.f32 0.0, %v1517
        %v1519 = vpop.f32.mrf.mxu0
        %1520 = vmatprep.mubr.f32.mxu0 %v1329
        %1521 = vmatmul.mubr.f32.gmra.mxu0 %v1328
        %v1522 = vpop.f32.mrf.mxu0
        %v1523 = vadd.f32 0.0, %v1522
        %v1524 = vpop.f32.mrf.mxu0
        %1525 = vmatprep.mubr.f32.mxu0 %v1331
        %1526 = vmatmul.mubr.f32.gmra.mxu0 %v1330
        %v1527 = vpop.f32.mrf.mxu0
        %v1528 = vadd.f32 0.0, %v1527
        %v1529 = vpop.f32.mrf.mxu0
        %1530 = vmatprep.mubr.f32.mxu0 %v1333
        %1531 = vmatmul.mubr.f32.gmra.mxu0 %v1332
        %v1532 = vpop.f32.mrf.mxu0
        %v1533 = vadd.f32 0.0, %v1532
        %v1534 = vpop.f32.mrf.mxu0
        %1535 = vmatprep.mubr.f32.mxu0 %v1335
        %1536 = vmatmul.mubr.f32.gmra.mxu0 %v1334
        %v1537 = vpop.f32.mrf.mxu0
        %v1538 = vadd.f32 0.0, %v1537
        %v1539 = vpop.f32.mrf.mxu0
        %1540 = vmatprep.mubr.f32.mxu0 %v1337
        %1541 = vmatmul.mubr.f32.gmra.mxu0 %v1336
        %v1542 = vpop.f32.mrf.mxu0
        %v1543 = vadd.f32 0.0, %v1542
        %v1544 = vpop.f32.mrf.mxu0
        %1545 = vmatprep.mubr.f32.mxu0 %v1339
        %1546 = vmatmul.mubr.f32.gmra.mxu0 %v1338
        %v1547 = vpop.f32.mrf.mxu0
        %v1548 = vadd.f32 0.0, %v1547
        %v1549 = vpop.f32.mrf.mxu0
        %1550 = vmatprep.mubr.f32.mxu0 %v1341
        %1551 = vmatmul.mubr.f32.gmra.mxu0 %v1340
        %v1552 = vpop.f32.mrf.mxu0
        %v1553 = vadd.f32 0.0, %v1552
        %v1554 = vpop.f32.mrf.mxu0
        %1555 = vmatprep.mubr.f32.mxu0 %v1343
        %1556 = vmatmul.mubr.f32.gmra.mxu0 %v1342
        %v1557 = vpop.f32.mrf.mxu0
        %v1558 = vadd.f32 0.0, %v1557
        %v1559 = vpop.f32.mrf.mxu0
        %1560 = vmatprep.mubr.f32.mxu0 %v1345
        %1561 = vmatmul.mubr.f32.gmra.mxu0 %v1344
        %v1562 = vpop.f32.mrf.mxu0
        %v1563 = vadd.f32 0.0, %v1562
        %v1564 = vpop.f32.mrf.mxu0
        %1565 = vmatprep.mubr.f32.mxu0 %v1347
        %1566 = vmatmul.mubr.f32.gmra.mxu0 %v1346
        %v1567 = vpop.f32.mrf.mxu0
        %v1568 = vadd.f32 0.0, %v1567
        %v1569 = vpop.f32.mrf.mxu0
        %1570 = vmatprep.mubr.f32.mxu0 %v1349
        %1571 = vmatmul.mubr.f32.gmra.mxu0 %v1348
        %v1572 = vpop.f32.mrf.mxu0
        %v1573 = vadd.f32 0.0, %v1572
        %v1574 = vpop.f32.mrf.mxu0
        %1575 = vmatprep.mubr.f32.mxu0 %v1351
        %1576 = vmatmul.mubr.f32.gmra.mxu0 %v1350
        %v1577 = vpop.f32.mrf.mxu0
        %v1578 = vadd.f32 0.0, %v1577
        %v1579 = vpop.f32.mrf.mxu0
        %1580 = vmatprep.mubr.f32.mxu0 %v1353
        %1581 = vmatmul.mubr.f32.gmra.mxu0 %v1352
        %v1582 = vpop.f32.mrf.mxu0
        %v1583 = vadd.f32 0.0, %v1582
        %v1584 = vpop.f32.mrf.mxu0
        %1585 = vmatprep.mubr.f32.mxu0 %v1355
        %1586 = vmatmul.mubr.f32.gmra.mxu0 %v1354
        %v1587 = vpop.f32.mrf.mxu0
        %v1588 = vadd.f32 0.0, %v1587
        %v1589 = vpop.f32.mrf.mxu0
        %1590 = vmatprep.mubr.f32.mxu0 %v1357
        %1591 = vmatmul.mubr.f32.gmra.mxu0 %v1356
        %v1592 = vpop.f32.mrf.mxu0
        %v1593 = vadd.f32 0.0, %v1592
        %v1594 = vpop.f32.mrf.mxu0
        %1595 = vmatprep.mubr.f32.mxu0 %v1359
        %1596 = vmatmul.mubr.f32.gmra.mxu0 %v1358
        %v1597 = vpop.f32.mrf.mxu0
        %v1598 = vadd.f32 0.0, %v1597
        %v1599 = vpop.f32.mrf.mxu0
        %1600 = vdwg.mxu0
        %v1601 = vadd.f32 %v1360, %v1483
        %v1602 = vadd.f32 %v1361, %v1488
        %v1603 = vadd.f32 %v1362, %v1493
        %v1604 = vadd.f32 %v1363, %v1498
        %v1605 = vadd.f32 %v1364, %v1503
        %v1606 = vadd.f32 %v1365, %v1508
        %v1607 = vadd.f32 %v1366, %v1513
        %v1608 = vadd.f32 %v1367, %v1518
        %v1609 = vadd.f32 %v1368, %v1523
        %v1610 = vadd.f32 %v1369, %v1528
        %v1611 = vadd.f32 %v1370, %v1533
        %v1612 = vadd.f32 %v1371, %v1538
        %v1613 = vadd.f32 %v1372, %v1543
        %v1614 = vadd.f32 %v1373, %v1548
        %v1615 = vadd.f32 %v1374, %v1553
        %v1616 = vadd.f32 %v1375, %v1558
        %v1617 = vadd.f32 %v1376, %v1563
        %v1618 = vadd.f32 %v1377, %v1568
        %v1619 = vadd.f32 %v1378, %v1573
        %v1620 = vadd.f32 %v1379, %v1578
        %v1621 = vadd.f32 %v1380, %v1583
        %v1622 = vadd.f32 %v1381, %v1588
        %v1623 = vadd.f32 %v1382, %v1593
        %v1624 = vadd.f32 %v1383, %v1598
        %1625 = vst [vmem:[%s399] sm:$0xff] %v1601
        %1626 = vst [vmem:[%s399 + $0x8] sm:$0xff] %v1602
        %1627 = vst [vmem:[%s399 + $0x10] sm:$0xff] %v1603
        %1628 = vst [vmem:[%s399 + $0x18] sm:$0xff] %v1604
        %1629 = vst [vmem:[%s399 + $0x20] sm:$0xff] %v1605
        %1630 = vst [vmem:[%s399 + $0x28] sm:$0xff] %v1606
        %1631 = vst [vmem:[%s399 + $0x30] sm:$0xff] %v1607
        %1632 = vst [vmem:[%s399 + $0x38] sm:$0xff] %v1608
        %1633 = vst [vmem:[%s399 + $0x40] sm:$0xff] %v1609
        %1634 = vst [vmem:[%s399 + $0x48] sm:$0xff] %v1610
        %1635 = vst [vmem:[%s399 + $0x50] sm:$0xff] %v1611
        %1636 = vst [vmem:[%s399 + $0x58] sm:$0xff] %v1612
        %1637 = vst [vmem:[%s399 + $0x60] sm:$0xff] %v1613
        %1638 = vst [vmem:[%s399 + $0x68] sm:$0xff] %v1614
        %1639 = vst [vmem:[%s399 + $0x70] sm:$0xff] %v1615
        %1640 = vst [vmem:[%s399 + $0x78] sm:$0xff] %v1616
        %1641 = vst [vmem:[%s399 + $0x80] sm:$0xff] %v1617
        %1642 = vst [vmem:[%s399 + $0x88] sm:$0xff] %v1618
        %1643 = vst [vmem:[%s399 + $0x90] sm:$0xff] %v1619
        %1644 = vst [vmem:[%s399 + $0x98] sm:$0xff] %v1620
        %1645 = vst [vmem:[%s399 + $0xa0] sm:$0xff] %v1621
        %1646 = vst [vmem:[%s399 + $0xa8] sm:$0xff] %v1622
        %1647 = vst [vmem:[%s399 + $0xb0] sm:$0xff] %v1623
        %1648 = vst [vmem:[%s399 + $0xb8] sm:$0xff] %v1624
        %s1649 = sand.u32 %s214, 1
        %s1650 = scalar_lea.sflag [#allocation5], %s1649
        %s1651 = sand.u32 %s214, 1
        %s1652 = smul.addr %s1651, 192
        %s1653 = scalar_lea.vmem [#allocation9], %s1652
        // Predicated region
        $region65: #{tpu_custom_call.1} parent=47 // pred_check
          %p1654 = pneg %p224
        $region66: #{tpu_custom_call.1} parent=47 // pred_check_branch
          %1656 = sbr.rel (%p1654) target = $region68
        $region67: #{tpu_custom_call.1} parent=47 // pred_region
          %s1657 = smul.u32 24, %s31
          %s1659 = ssub.s32 3072, 3072
          %1660 = vsyncadd %s1650, %s1659
          %s1661 = smul.addr %s1657, 128
          %s1662 = scalar_lea.hbm %s7, %s1661
          %s1663 = sshll.u32 %s1653, 4
          %s1664 = int_to_ptr.vmem [resolvable:$true] %s1663
          %1669 = dma.vmem_to_hbm [thread:$0]  %s1664, 3072, %s1662, %s1650, 128, 128, 8
        $region68: #{tpu_custom_call.1} parent=47 // pred_fallthru
          _
      $region48: #{tpu_custom_call.1} parent=5 // pred_fallthru
        _
      %p1670 = scmp.le.s32.totalorder 2, %s22
      // Predicated region
      $region69: #{tpu_custom_call.1} parent=5 // pred_check
        %p1671 = pneg %p1670
      $region70: #{tpu_custom_call.1} parent=5 // pred_check_branch
        %1673 = sbr.rel (%p1671) target = $region72
      $region71: #{tpu_custom_call.1} parent=5 // pred_region
        %s1674 = ssub.s32 %s22, 2
        // Predicated region
        $region73: #{tpu_custom_call.1} parent=71 // pred_check
          %p1675 = pneg %p230
        $region74: #{tpu_custom_call.1} parent=71 // pred_check_branch
          %1677 = sbr.rel (%p1675) target = $region76
        $region75: #{tpu_custom_call.1} parent=71 // pred_region
          %s1678 = sand.u32 %s215, 1
          %s1679 = scalar_lea.sflag [#allocation5], %s1678
          %s1680 = sand.u32 %s215, 1
          %s1681 = smul.addr %s1680, 192
          %s1682 = scalar_lea.vmem [#allocation9], %s1681
          %1683 = dma.done %s1679, 3072
        $region76: #{tpu_custom_call.1} parent=71 // pred_fallthru
          _
      $region72: #{tpu_custom_call.1} parent=5 // pred_fallthru
        _
    $region6: #{tpu_custom_call.1} parent=1 // loop_footer
      %s26 = sadd.s32 1, %s22
    $region7: #{tpu_custom_call.1} parent=1 // loop_footer_branch
      %21 = sbr.rel target = $region3
    $region8: #{tpu_custom_call.1} parent=1 // loop_exit
      _
    %1684 = vsyncpa [#allocation4], 1
    %s1685 = scalar_lea.sflag [#allocation4], 1
    %1686 = vsyncpa %s1685, 1
    %1687 = vsyncpa [#allocation7], 1
    %s1688 = scalar_lea.sflag [#allocation7], 1
    %1689 = vsyncpa %s1688, 1
    %1690 = vsyncpa [#allocation5], 1
    %s1691 = scalar_lea.sflag [#allocation5], 1
    %1692 = vsyncpa %s1691, 1

</llo_original>
